<compile_context>
chip_gen: v6e
topology: v6e:2x2x1
jax: 0.10.0
libtpu: 0.0.40
codegen_flags: <defaults>
</compile_context>

<pallas_src>
import jax
import jax.numpy as jnp
from jax.experimental import pallas as pl
from jax.experimental.pallas import tpu as pltpu


# ----------------------------------------------------------------------------
# Pallas kernel (built as a closure so Cin / Wo / THW are static).
# All tensors are channels-first with the flattened spatial axis on lanes.
# ----------------------------------------------------------------------------
def _make_kernel(Cin, Wo, THW):
    def kernel(x_ref, y_ref, lm_ref, rm_ref, w3_ref, bnb_ref,
               wh_ref, wy_ref, bc_ref, out_ref):
        xt = x_ref[0, 0]                 # (Cin, W_TILE) bf16: height-padded window
        lm = lm_ref[...]                 # (1, THW) bf16: 0 where output col == 0
        rm = rm_ref[...]                 # (1, THW) bf16: 0 where output col == Wo-1

        # In-VMEM im2col of the 9 taps of the 3x3 conv: in the flattened,
        # height-padded layout, tap (dy, dx) is a constant lane shift of
        # dy*Wo + dx; the dx = -1/+1 taps wrap across image rows and are
        # zeroed at the corresponding output columns by the masks.
        taps = []
        for dy in range(3):
            for dx in range(3):
                o = dy * Wo + dx
                s = xt[:, o:o + THW]                     # (Cin, THW)
                if dx == 0:
                    s = s * lm
                elif dx == 2:
                    s = s * rm
                taps.append(s)
        col = jnp.concatenate(taps, axis=0)              # (9*Cin, THW)

        # Conv2d(Cin, 64, 3, pad=1) with the BN scale already folded into the
        # weights -> one K=9*Cin MXU matmul; epilogue = BN bias + ReLU (f32).
        acc = jnp.dot(w3_ref[...], col, preferred_element_type=jnp.float32)
        h = jnp.maximum(acc + bnb_ref[...], 0.0)         # (64, THW) f32

        # cat([h, y]) -> Conv1x1(128->64) -> Conv1x1(64->Cout) folded into two
        # (Cout, 64) matmuls (exact: no nonlinearity between the 1x1 convs).
        yb = y_ref[0].astype(jnp.bfloat16)               # (64, THW), cast in VMEM
        o_ = (jnp.dot(wh_ref[...], h.astype(jnp.bfloat16),
                      preferred_element_type=jnp.float32)
              + jnp.dot(wy_ref[...], yb, preferred_element_type=jnp.float32)
              + bc_ref[...])
        out_ref[0] = jax.nn.sigmoid(o_)                  # (Cout, THW) f32

    return kernel


# ----------------------------------------------------------------------------
# XLA glue
# ----------------------------------------------------------------------------
def _bilinear_up2_align_corners(x_nchw):
    """Exact UpsamplingBilinear2d(scale_factor=2, align_corners=True), NCHW."""
    N, C, H, W = x_nchw.shape
    Ho, Wo = 2 * H, 2 * W

    def axis_weights(out_size, in_size):
        src = jnp.arange(out_size, dtype=jnp.float32) * (
            (in_size - 1) / (out_size - 1))
        i0 = jnp.clip(jnp.floor(src).astype(jnp.int32), 0, in_size - 1)
        i1 = jnp.clip(i0 + 1, 0, in_size - 1)
        w = src - i0.astype(jnp.float32)
        return i0, i1, w

    hi0, hi1, hw = axis_weights(Ho, H)
    wi0, wi1, ww = axis_weights(Wo, W)
    xh = (x_nchw[:, :, hi0, :] * (1.0 - hw)[None, None, :, None]
          + x_nchw[:, :, hi1, :] * hw[None, None, :, None])
    xhw = xh[:, :, :, wi0] * (1.0 - ww) + xh[:, :, :, wi1] * ww
    return xhw


def _pick_row_tile(Ho, Wo, Cin, Cout,
                   vmem_budget_bytes=28 * 1024 * 1024, max_tile=32768):
    """Largest row-tile TH (divisor of Ho) such that THW = TH*Wo is a 128
    multiple and the double-buffered working set fits the VMEM budget."""
    K3 = 9 * Cin
    per_elem = (2 * 2 * Cin            # x window (bf16, double-buffered)
                + 2 * 4 * 64           # y tile (f32, double-buffered)
                + 2 * 4 * Cout         # out tile (f32, double-buffered)
                + 2 * 2 * K3           # in-kernel im2col + tap temporaries
                + 4 * 64 + 2 * 64      # f32 acc + bf16 h
                + 2 * 64               # in-kernel bf16 cast of y
                + 4 * Cout + 8)        # logits + masks
    cap = min(max_tile, max(vmem_budget_bytes // per_elem, Wo))
    ths = [t for t in range(1, Ho + 1) if Ho % t == 0]
    good = [t for t in ths if t * Wo <= cap and (t * Wo) % 128 == 0]
    if good:
        return max(good)
    # Fallback: full-height tile (block spans the whole spatial axis, which is
    # always a legal lane layout; may be VMEM-heavy for huge odd-width images).
    return Ho


def outstem_forward(x_nchw, y_nchw, params, *,
                    vmem_limit_bytes=48 * 1024 * 1024):
    """OutStem forward. x: (N,Cin,H,W), y: (N,64,2H,2W) -> (N,Cout,2H,2W)."""
    x = x_nchw.astype(jnp.float32)
    y = y_nchw.astype(jnp.float32)
    N, Cin, H, W = x.shape
    Ho, Wo = 2 * H, 2 * W
    HW = Ho * Wo
    K3 = 9 * Cin
    Cout = params["wc"].shape[0]

    assert y.shape == (N, 64, Ho, Wo)
    assert params["w3"].shape == (64, Cin, 3, 3)       # PyTorch OIHW
    assert params["w1"].shape == (64, 128, 1, 1)
    assert params["wc"].shape == (Cout, 64, 1, 1)

    # --- spatial tiling (VMEM- and K3-aware) over the flattened H*W axis.
    TH = _pick_row_tile(Ho, Wo, Cin, Cout)
    THW = TH * Wo
    nT = Ho // TH
    W_TILE = THW + 2 * Wo + 2          # row-tile window incl. halo rows + guards

    # --- x branch glue (Cin-channel scale -> cheap vs. the 64-channel y stream)
    xu = _bilinear_up2_align_corners(x)                              # (N,Cin,Ho,Wo)
    xhp = jnp.pad(xu, ((0, 0), (0, 0), (1, 1), (0, 0)))              # height pad
    xflat = xhp.reshape(N, Cin, (Ho + 2) * Wo).astype(jnp.bfloat16)
    xflat = jnp.pad(xflat, ((0, 0), (0, 0), (1, 1)))                 # flat guards
    starts = jnp.arange(nT, dtype=jnp.int32) * THW
    idx = starts[:, None] + jnp.arange(W_TILE, dtype=jnp.int32)[None, :]
    x_tiles = jnp.transpose(jnp.take(xflat, idx, axis=2), (0, 2, 1, 3))
    # (N, nT, Cin, W_TILE)
    # TODO(synk): express these halo windows with an element-indexed BlockSpec
    # to avoid materializing the (small) overlapping row tiles in HBM.

    # y / out keep their native NCHW memory, viewed flat (free reshape) so the
    # lane dim is the large 128-aligned spatial axis; no pre-kernel cast pass.
    yf = y.reshape(N, 64, HW)

    # Column-edge masks for the dx = -1 / +1 taps (periodic -> tile-invariant).
    cols = jnp.arange(THW, dtype=jnp.int32) % Wo
    lmask = (cols != 0).astype(jnp.bfloat16).reshape(1, THW)
    rmask = (cols != Wo - 1).astype(jnp.bfloat16).reshape(1, THW)

    # --- weights: PyTorch OIHW -> matmul layouts; all folds composed in f32.
    # TODO(synk): train-mode batch statistics are not modeled (eval-mode BN).
    eps = 1e-5
    scale = params["bn_gamma"] / jnp.sqrt(params["bn_var"] + eps)
    w3m = (jnp.transpose(params["w3"], (0, 2, 3, 1)).reshape(64, K3)
           * scale[:, None]).astype(jnp.bfloat16)                    # BN scale folded
    bnb = (params["bn_beta"] - params["bn_mean"] * scale
           ).reshape(64, 1).astype(jnp.float32)
    wfold = jnp.dot(params["wc"].reshape(Cout, 64).astype(jnp.float32),
                    params["w1"].reshape(64, 128).astype(jnp.float32))
    wh = wfold[:, :64].astype(jnp.bfloat16)                          # acts on h
    wy = wfold[:, 64:].astype(jnp.bfloat16)                          # acts on y
    bc = params["bc"].reshape(Cout, 1).astype(jnp.float32)

    kernel = _make_kernel(Cin, Wo, THW)

    out_flat = pl.pallas_call(
        kernel,
        out_shape=jax.ShapeDtypeStruct((N, Cout, HW), jnp.float32),
        grid_spec=pltpu.PrefetchScalarGridSpec(
            num_scalar_prefetch=0,
            grid=(N, nT),
            in_specs=[
                pl.BlockSpec((1, 1, Cin, W_TILE), lambda n, t: (n, t, 0, 0)),
                pl.BlockSpec((1, 64, THW), lambda n, t: (n, 0, t)),
                pl.BlockSpec((1, THW), lambda n, t: (0, 0)),          # left mask
                pl.BlockSpec((1, THW), lambda n, t: (0, 0)),          # right mask
                pl.BlockSpec((64, K3), lambda n, t: (0, 0)),          # 3x3 w (BN folded)
                pl.BlockSpec((64, 1), lambda n, t: (0, 0)),           # BN bias
                pl.BlockSpec((Cout, 64), lambda n, t: (0, 0)),        # folded 1x1 (h part)
                pl.BlockSpec((Cout, 64), lambda n, t: (0, 0)),        # folded 1x1 (y part)
                pl.BlockSpec((Cout, 1), lambda n, t: (0, 0)),         # final bias
            ],
            out_specs=pl.BlockSpec((1, Cout, THW), lambda n, t: (n, 0, t)),
        ),
        compiler_params=pltpu.CompilerParams(
            dimension_semantics=("parallel", "parallel"),
            vmem_limit_bytes=vmem_limit_bytes,
        ),
    )(x_tiles, yf, lmask, rmask, w3m, bnb, wh, wy, bc)

    return out_flat.reshape(N, Cout, Ho, Wo)


# ----------------------------------------------------------------------------
# Pure-JAX f32 reference of the PyTorch graph (sanity check only).
# ----------------------------------------------------------------------------
def _reference_forward(x_nchw, y_nchw, params):
    x = x_nchw.astype(jnp.float32)
    y = y_nchw.astype(jnp.float32)
    Cout = params["wc"].shape[0]
    xu = _bilinear_up2_align_corners(x)
    h = jax.lax.conv_general_dilated(
        xu, params["w3"], window_strides=(1, 1), padding=((1, 1), (1, 1)),
        dimension_numbers=("NCHW", "OIHW", "NCHW"))
    eps = 1e-5
    scale = params["bn_gamma"] / jnp.sqrt(params["bn_var"] + eps)
    bias = params["bn_beta"] - params["bn_mean"] * scale
    h = jnp.maximum(h * scale[None, :, None, None] + bias[None, :, None, None], 0.0)
    cat = jnp.concatenate([h, y], axis=1)
    z = jnp.einsum("oi,nihw->nohw", params["w1"].reshape(64, 128), cat)
    o = jnp.einsum("oi,nihw->nohw", params["wc"].reshape(Cout, 64), z) \
        + params["bc"].reshape(1, Cout, 1, 1)
    return jax.nn.sigmoid(o)


if __name__ == "__main__":
    key = jax.random.PRNGKey(0)
    N, Cin, H, W = 2, 4, 16, 16
    Cout = 2
    ks = jax.random.split(key, 10)

    # Inputs follow the PyTorch NCHW contract: x (N,Cin,H,W), y (N,64,2H,2W).
    x = jax.random.normal(ks[0], (N, Cin, H, W), jnp.float32)
    y = jax.random.normal(ks[1], (N, 64, 2 * H, 2 * W), jnp.float32)

    params = {
        # PyTorch-native layouts (Conv2d: OIHW; BN: per-channel vectors).
        "w3": jax.random.normal(ks[2], (64, Cin, 3, 3), jnp.float32) * 0.1,
        "bn_gamma": jax.random.uniform(ks[3], (64,), jnp.float32, minval=0.5, maxval=1.5),
        "bn_beta": jax.random.normal(ks[4], (64,), jnp.float32) * 0.1,
        "bn_mean": jax.random.normal(ks[5], (64,), jnp.float32) * 0.1,
        "bn_var": jax.random.uniform(ks[6], (64,), jnp.float32, minval=0.5, maxval=1.5),
        "w1": jax.random.normal(ks[7], (64, 128, 1, 1), jnp.float32) * 0.05,
        "wc": jax.random.normal(ks[8], (Cout, 64, 1, 1), jnp.float32) * 0.1,
        "bc": jax.random.normal(ks[9], (Cout,), jnp.float32) * 0.1,
    }

    out = outstem_forward(x, y, params)
    jax.block_until_ready(out)
    assert out.shape == (N, Cout, 2 * H, 2 * W)
    assert bool(jnp.all(jnp.isfinite(out)))

    ref = _reference_forward(x, y, params)
    err = float(jnp.max(jnp.abs(out - ref)))
    assert err < 5e-2, f"max abs err vs reference: {err}"

    print("KERNEL_OK")
</pallas_src>

<mosaic_0001>
module attributes {stable_mosaic.version = 11 : i64} {
  func.func @kernel(%arg0: i32, %arg1: i32, %arg2: memref<1x1x4x1090xbf16, #tpu.memory_space<vmem>>, %arg3: memref<1x64x1024xf32, #tpu.memory_space<vmem>>, %arg4: memref<1x1024xbf16, #tpu.memory_space<vmem>>, %arg5: memref<1x1024xbf16, #tpu.memory_space<vmem>>, %arg6: memref<64x36xbf16, #tpu.memory_space<vmem>>, %arg7: memref<64x1xf32, #tpu.memory_space<vmem>>, %arg8: memref<2x64xbf16, #tpu.memory_space<vmem>>, %arg9: memref<2x64xbf16, #tpu.memory_space<vmem>>, %arg10: memref<2x1xf32, #tpu.memory_space<vmem>>, %arg11: memref<1x2x1024xf32, #tpu.memory_space<vmem>>) attributes {dimension_semantics = [#tpu.dimension_semantics<parallel>, #tpu.dimension_semantics<parallel>], iteration_bounds = array<i64: 2, 1>, scalar_prefetch = 0 : i64, scratch_operands = 0 : i64, tpu.core_type = #tpu.core_type<tc>, window_params = [{transform_indices = @transform_0, window_bounds = array<i64: 1, 1, 4, 1090>}, {transform_indices = @transform_1, window_bounds = array<i64: 1, 64, 1024>}, {pipeline_mode = #tpu.pipeline_mode<synchronous>, transform_indices = @transform_2, window_bounds = array<i64: 1, 1024>}, {pipeline_mode = #tpu.pipeline_mode<synchronous>, transform_indices = @transform_3, window_bounds = array<i64: 1, 1024>}, {pipeline_mode = #tpu.pipeline_mode<synchronous>, transform_indices = @transform_4, window_bounds = array<i64: 64, 36>}, {pipeline_mode = #tpu.pipeline_mode<synchronous>, transform_indices = @transform_5, window_bounds = array<i64: 64, 1>}, {pipeline_mode = #tpu.pipeline_mode<synchronous>, transform_indices = @transform_6, window_bounds = array<i64: 2, 64>}, {pipeline_mode = #tpu.pipeline_mode<synchronous>, transform_indices = @transform_7, window_bounds = array<i64: 2, 64>}, {pipeline_mode = #tpu.pipeline_mode<synchronous>, transform_indices = @transform_8, window_bounds = array<i64: 2, 1>}, {transform_indices = @transform_9, window_bounds = array<i64: 1, 2, 1024>}]} {
    %c0 = arith.constant 0 : index
    %c0_0 = arith.constant 0 : index
    %c0_1 = arith.constant 0 : index
    %c0_2 = arith.constant 0 : index
    %0 = vector.load %arg2[%c0, %c0_0, %c0_1, %c0_2] : memref<1x1x4x1090xbf16, #tpu.memory_space<vmem>>, vector<1x1x4x1090xbf16>
    %1 = vector.shape_cast %0 : vector<1x1x4x1090xbf16> to vector<4x1090xbf16>
    %c0_3 = arith.constant 0 : index
    %c0_4 = arith.constant 0 : index
    %2 = vector.load %arg4[%c0_3, %c0_4] : memref<1x1024xbf16, #tpu.memory_space<vmem>>, vector<1x1024xbf16>
    %c0_5 = arith.constant 0 : index
    %c0_6 = arith.constant 0 : index
    %3 = vector.load %arg5[%c0_5, %c0_6] : memref<1x1024xbf16, #tpu.memory_space<vmem>>, vector<1x1024xbf16>
    %4 = vector.extract_strided_slice %1 {offsets = [0, 0], sizes = [4, 1024], strides = [1, 1]} : vector<4x1090xbf16> to vector<4x1024xbf16>
    %5 = vector.broadcast %2 : vector<1x1024xbf16> to vector<4x1024xbf16>
    %6 = arith.mulf %4, %5 : vector<4x1024xbf16>
    %7 = vector.extract_strided_slice %1 {offsets = [0, 1], sizes = [4, 1024], strides = [1, 1]} : vector<4x1090xbf16> to vector<4x1024xbf16>
    %8 = vector.extract_strided_slice %1 {offsets = [0, 2], sizes = [4, 1024], strides = [1, 1]} : vector<4x1090xbf16> to vector<4x1024xbf16>
    %9 = vector.broadcast %3 : vector<1x1024xbf16> to vector<4x1024xbf16>
    %10 = arith.mulf %8, %9 : vector<4x1024xbf16>
    %11 = vector.extract_strided_slice %1 {offsets = [0, 32], sizes = [4, 1024], strides = [1, 1]} : vector<4x1090xbf16> to vector<4x1024xbf16>
    %12 = vector.broadcast %2 : vector<1x1024xbf16> to vector<4x1024xbf16>
    %13 = arith.mulf %11, %12 : vector<4x1024xbf16>
    %14 = vector.extract_strided_slice %1 {offsets = [0, 33], sizes = [4, 1024], strides = [1, 1]} : vector<4x1090xbf16> to vector<4x1024xbf16>
    %15 = vector.extract_strided_slice %1 {offsets = [0, 34], sizes = [4, 1024], strides = [1, 1]} : vector<4x1090xbf16> to vector<4x1024xbf16>
    %16 = vector.broadcast %3 : vector<1x1024xbf16> to vector<4x1024xbf16>
    %17 = arith.mulf %15, %16 : vector<4x1024xbf16>
    %18 = vector.extract_strided_slice %1 {offsets = [0, 64], sizes = [4, 1024], strides = [1, 1]} : vector<4x1090xbf16> to vector<4x1024xbf16>
    %19 = vector.broadcast %2 : vector<1x1024xbf16> to vector<4x1024xbf16>
    %20 = arith.mulf %18, %19 : vector<4x1024xbf16>
    %21 = vector.extract_strided_slice %1 {offsets = [0, 65], sizes = [4, 1024], strides = [1, 1]} : vector<4x1090xbf16> to vector<4x1024xbf16>
    %22 = vector.extract_strided_slice %1 {offsets = [0, 66], sizes = [4, 1024], strides = [1, 1]} : vector<4x1090xbf16> to vector<4x1024xbf16>
    %23 = vector.broadcast %3 : vector<1x1024xbf16> to vector<4x1024xbf16>
    %24 = arith.mulf %22, %23 : vector<4x1024xbf16>
    %25 = tpu.concatenate %6, %7, %10, %13, %14, %17, %20, %21, %24 in 0 : vector<4x1024xbf16>, vector<4x1024xbf16>, vector<4x1024xbf16>, vector<4x1024xbf16>, vector<4x1024xbf16>, vector<4x1024xbf16>, vector<4x1024xbf16>, vector<4x1024xbf16>, vector<4x1024xbf16> -> vector<36x1024xbf16>
    %c0_7 = arith.constant 0 : index
    %c0_8 = arith.constant 0 : index
    %26 = vector.load %arg6[%c0_7, %c0_8] : memref<64x36xbf16, #tpu.memory_space<vmem>>, vector<64x36xbf16>
    %cst = arith.constant dense<0.000000e+00> : vector<64x1024xf32>
    %27 = tpu.matmul %26, %25, %cst {dimension_numbers = #tpu.dot_dimension_numbers<[1], [0], [0], [1], [0, 0, 1, 1], [], []>} : vector<64x36xbf16>, vector<36x1024xbf16>, vector<64x1024xf32> -> vector<64x1024xf32>
    %c0_9 = arith.constant 0 : index
    %c0_10 = arith.constant 0 : index
    %28 = vector.load %arg7[%c0_9, %c0_10] : memref<64x1xf32, #tpu.memory_space<vmem>>, vector<64x1xf32>
    %29 = vector.broadcast %28 : vector<64x1xf32> to vector<64x1024xf32>
    %30 = arith.addf %27, %29 : vector<64x1024xf32>
    %cst_11 = arith.constant 0.000000e+00 : f32
    %31 = vector.broadcast %cst_11 : f32 to vector<64x1024xf32>
    %32 = arith.maximumf %30, %31 : vector<64x1024xf32>
    %c0_12 = arith.constant 0 : index
    %c0_13 = arith.constant 0 : index
    %c0_14 = arith.constant 0 : index
    %33 = vector.load %arg3[%c0_12, %c0_13, %c0_14] : memref<1x64x1024xf32, #tpu.memory_space<vmem>>, vector<1x64x1024xf32>
    %34 = vector.shape_cast %33 : vector<1x64x1024xf32> to vector<64x1024xf32>
    %35 = arith.truncf %34 : vector<64x1024xf32> to vector<64x1024xbf16>
    %c0_15 = arith.constant 0 : index
    %c0_16 = arith.constant 0 : index
    %36 = vector.load %arg8[%c0_15, %c0_16] : memref<2x64xbf16, #tpu.memory_space<vmem>>, vector<2x64xbf16>
    %37 = arith.truncf %32 : vector<64x1024xf32> to vector<64x1024xbf16>
    %cst_17 = arith.constant dense<0.000000e+00> : vector<2x1024xf32>
    %38 = tpu.matmul %36, %37, %cst_17 {dimension_numbers = #tpu.dot_dimension_numbers<[1], [0], [0], [1], [0, 0, 1, 1], [], []>} : vector<2x64xbf16>, vector<64x1024xbf16>, vector<2x1024xf32> -> vector<2x1024xf32>
    %c0_18 = arith.constant 0 : index
    %c0_19 = arith.constant 0 : index
    %39 = vector.load %arg9[%c0_18, %c0_19] : memref<2x64xbf16, #tpu.memory_space<vmem>>, vector<2x64xbf16>
    %cst_20 = arith.constant dense<0.000000e+00> : vector<2x1024xf32>
    %40 = tpu.matmul %39, %35, %cst_20 {dimension_numbers = #tpu.dot_dimension_numbers<[1], [0], [0], [1], [0, 0, 1, 1], [], []>} : vector<2x64xbf16>, vector<64x1024xbf16>, vector<2x1024xf32> -> vector<2x1024xf32>
    %41 = arith.addf %38, %40 : vector<2x1024xf32>
    %c0_21 = arith.constant 0 : index
    %c0_22 = arith.constant 0 : index
    %42 = vector.load %arg10[%c0_21, %c0_22] : memref<2x1xf32, #tpu.memory_space<vmem>>, vector<2x1xf32>
    %43 = vector.broadcast %42 : vector<2x1xf32> to vector<2x1024xf32>
    %44 = arith.addf %41, %43 : vector<2x1024xf32>
    %45 = arith.negf %44 : vector<2x1024xf32>
    %46 = math.exp %45 : vector<2x1024xf32>
    %cst_23 = arith.constant 1.000000e+00 : f32
    %47 = vector.broadcast %cst_23 : f32 to vector<2x1024xf32>
    %48 = arith.addf %47, %46 : vector<2x1024xf32>
    %49 = arith.divf %47, %48 : vector<2x1024xf32>
    %c0_24 = arith.constant 0 : index
    %c0_25 = arith.constant 0 : index
    %c0_26 = arith.constant 0 : index
    %50 = vector.load %arg11[%c0_24, %c0_25, %c0_26] : memref<1x2x1024xf32, #tpu.memory_space<vmem>>, vector<1x2x1024xf32>
    %51 = vector.shape_cast %50 : vector<1x2x1024xf32> to vector<2x1024xf32>
    %52 = vector.shape_cast %49 : vector<2x1024xf32> to vector<1x2x1024xf32>
    tpu.vector_store %arg11[%c0_24, %c0_25, %c0_26], %52 {strides = array<i32>} : memref<1x2x1024xf32, #tpu.memory_space<vmem>>, vector<1x2x1024xf32>,
    return
  }
  func.func @transform_0(%arg0: i32, %arg1: i32) -> (i32, i32, i32, i32) {
    %c0_i32 = arith.constant 0 : i32
    %c0_i32_0 = arith.constant 0 : i32
    %c0_i32_1 = arith.constant 0 : i32
    return %arg0, %arg1, %c0_i32, %c0_i32_0 : i32, i32, i32, i32
  }
  func.func @transform_1(%arg0: i32, %arg1: i32) -> (i32, i32, i32) {
    %c0_i32 = arith.constant 0 : i32
    %c0_i32_0 = arith.constant 0 : i32
    return %arg0, %c0_i32, %arg1 : i32, i32, i32
  }
  func.func @transform_2(%arg0: i32, %arg1: i32) -> (i32, i32) {
    %c0_i32 = arith.constant 0 : i32
    %c0_i32_0 = arith.constant 0 : i32
    %c0_i32_1 = arith.constant 0 : i32
    return %c0_i32, %c0_i32_0 : i32, i32
  }
  func.func @transform_3(%arg0: i32, %arg1: i32) -> (i32, i32) {
    %c0_i32 = arith.constant 0 : i32
    %c0_i32_0 = arith.constant 0 : i32
    %c0_i32_1 = arith.constant 0 : i32
    return %c0_i32, %c0_i32_0 : i32, i32
  }
  func.func @transform_4(%arg0: i32, %arg1: i32) -> (i32, i32) {
    %c0_i32 = arith.constant 0 : i32
    %c0_i32_0 = arith.constant 0 : i32
    %c0_i32_1 = arith.constant 0 : i32
    return %c0_i32, %c0_i32_0 : i32, i32
  }
  func.func @transform_5(%arg0: i32, %arg1: i32) -> (i32, i32) {
    %c0_i32 = arith.constant 0 : i32
    %c0_i32_0 = arith.constant 0 : i32
    %c0_i32_1 = arith.constant 0 : i32
    return %c0_i32, %c0_i32_0 : i32, i32
  }
  func.func @transform_6(%arg0: i32, %arg1: i32) -> (i32, i32) {
    %c0_i32 = arith.constant 0 : i32
    %c0_i32_0 = arith.constant 0 : i32
    %c0_i32_1 = arith.constant 0 : i32
    return %c0_i32, %c0_i32_0 : i32, i32
  }
  func.func @transform_7(%arg0: i32, %arg1: i32) -> (i32, i32) {
    %c0_i32 = arith.constant 0 : i32
    %c0_i32_0 = arith.constant 0 : i32
    %c0_i32_1 = arith.constant 0 : i32
    return %c0_i32, %c0_i32_0 : i32, i32
  }
  func.func @transform_8(%arg0: i32, %arg1: i32) -> (i32, i32) {
    %c0_i32 = arith.constant 0 : i32
    %c0_i32_0 = arith.constant 0 : i32
    %c0_i32_1 = arith.constant 0 : i32
    return %c0_i32, %c0_i32_0 : i32, i32
  }
  func.func @transform_9(%arg0: i32, %arg1: i32) -> (i32, i32, i32) {
    %c0_i32 = arith.constant 0 : i32
    %c0_i32_0 = arith.constant 0 : i32
    return %arg0, %c0_i32, %arg1 : i32, i32, i32
  }
}

</mosaic_0001>

<llo_original>
// kernel: tpu_custom_call.1
$region0: #{tpu_custom_call.1}
  #allocation0 [shape = 'u32[]', space=smem, size = 0x4, offset = 0x4, fixed_abs, tag = 'smem constant byte address 0x4 - core index']
  #allocation1 [shape = 'u32[144,128]{1,0:T(1,128)}', space=vmem, size = 0x12000, scoped, tag = 'internal scratch']
  %s0 = inlined_call_operand.vmem [shape: bf16[2,1,4,1090], index: 0, kind: input, shape index: {}]
  %s1 = inlined_call_operand.hbm [shape: f32[2,64,1024], index: 1, kind: input, shape index: {}]
  %s2 = inlined_call_operand.vmem [shape: bf16[1,1024], index: 2, kind: input, shape index: {}]
  %s3 = inlined_call_operand.vmem [shape: bf16[1,1024], index: 3, kind: input, shape index: {}]
  %s4 = inlined_call_operand.vmem [shape: bf16[64,36], index: 4, kind: input, shape index: {}]
  %s5 = inlined_call_operand.vmem [shape: f32[64,1], index: 5, kind: input, shape index: {}]
  %s6 = inlined_call_operand.vmem [shape: bf16[2,64], index: 6, kind: input, shape index: {}]
  %s7 = inlined_call_operand.vmem [shape: bf16[2,64], index: 7, kind: input, shape index: {}]
  %s8 = inlined_call_operand.vmem [shape: f32[2,1], index: 8, kind: input, shape index: {}]
  %s9 = inlined_call_operand.hbm [shape: f32[2,2,1024], index: 9, kind: output, shape index: {}]
  %s10 = sld [smem:[#allocation0]]
  $region73: #{tpu_custom_call.1} parent=0
    _
  %s12 = ssub.s32 1, %s10
  %s13 = scalar_select 0, %s12, %s10
  $region1: #{tpu_custom_call.1} parent=0
    #allocation2 [shape = 'u8[524288]{0}', space=vmem, size = 0x80000, scoped, tag = 'input window, operand 1']
    #allocation3 [shape = 's32[2]{0}', space=sflag, size = 0x8, scoped, tag = 'scoped memory for tpu_custom_call.1']
    #allocation4 [shape = 's32[2]{0}', space=sflag, size = 0x8, scoped, tag = 'scoped memory for tpu_custom_call.1']
    #allocation5 [shape = 'u8[16384]{0}', space=vmem, size = 0x4000, scoped, tag = 'output window, operand 0']
    %14 = vsyncpa [#allocation3], 0
    %s15 = scalar_lea.sflag [#allocation3], 1
    %16 = vsyncpa %s15, 0
    %17 = vsyncpa [#allocation4], 0
    %s18 = scalar_lea.sflag [#allocation4], 1
    %19 = vsyncpa %s18, 0
    loop: start=0, step=1, limit=4
    $region2: #{tpu_custom_call.1} parent=1 // loop_pre_header
      _
    $region3: #{tpu_custom_call.1} parent=1 // loop_header
      %s21 = sphi 0, %s25
      %p22 = scmp.ge.s32.totalorder %s21, 4
      %s28 = sphi 0, %s40
      %s29 = sphi 0, %s36
      %s30 = sphi 0, %s28
      %s31 = sphi 0, %s29
      %s32 = sphi 0, %s30
      %s33 = sphi 0, %s31
      %s45 = sphi 0, %s47
      %s48 = sphi 0, %s45
      %s49 = sphi 0, %s48
      %s65 = sphi 0, %s49
      %s73 = sphi 0, %s75
      %s76 = sphi 0, %s73
      %s77 = sphi 0, %s76
      %s93 = sphi 0, %s77
      %s97 = sphi 0, %s97
      %s99 = sphi 0, %s97
      %s100 = sphi 0, %s99
      %s114 = sphi 0, %s100
      %s118 = sphi 0, %s118
      %s120 = sphi 0, %s118
      %s121 = sphi 0, %s120
      %s135 = sphi 0, %s121
      %s139 = sphi 0, %s139
      %s141 = sphi 0, %s139
      %s142 = sphi 0, %s141
      %s156 = sphi 0, %s142
      %s160 = sphi 0, %s160
      %s162 = sphi 0, %s160
      %s163 = sphi 0, %s162
      %s177 = sphi 0, %s163
      %s181 = sphi 0, %s181
      %s183 = sphi 0, %s181
      %s184 = sphi 0, %s183
      %s198 = sphi 0, %s184
      %s202 = sphi 0, %s202
      %s204 = sphi 0, %s202
      %s205 = sphi 0, %s204
      %s219 = sphi 0, %s205
      %s223 = sphi 0, %s223
      %s225 = sphi 0, %s223
      %s226 = sphi 0, %s225
      %s240 = sphi 0, %s226
      %s248 = sphi 0, %s250
      %s251 = sphi 0, %s248
      %s252 = sphi 0, %s251
      %s268 = sphi 0, %s252
    $region4: #{tpu_custom_call.1} parent=1 // loop_header_branch
      %24 = sbr.rel (%p22) target = $region8
    $region5: #{tpu_custom_call.1} parent=1 // loop_body
      %s26 = ssub.s32 %s21, 1
      %s27 = ssub.s32 %s21, 2
      %s34 = sadd.s32 1, %s29
      %p35 = scmp.ge.s32.totalorder %s34, 1
      %s36 = scalar_select %p35, 0, %s34
      %s37 = sadd.s32 1, %s28
      %s38 = scalar_select %p35, %s37, %s28
      %p39 = scmp.ge.s32.totalorder %s38, 2
      %s40 = scalar_select %p39, 0, %s38
      %s41 = ssub.s32 %s28, %s40
      %s42 = ssub.s32 %s29, %s36
      %s43 = sor.u32 %s41, %s42
      %p44 = scmp.eq.s32.totalorder %s43, 0
      %s46 = sadd.s32 %s45, 1
      %s47 = scalar_select %p44, %s45, %s46
      %p50 = pneg %p44
      %p51 = scmp.eq.s32.totalorder %s21, 1
      %p52 = por %p50, %p51
      %p53 = scmp.ne.s32.totalorder %s45, %s48
      %p54 = scmp.eq.s32.totalorder %s21, 0
      %p55 = por %p53, %p54
      %p56 = scmp.ne.s32.totalorder %s45, %s48
      %p57 = scmp.eq.s32.totalorder %s26, 1
      %p58 = por %p56, %p57
      %p59 = scmp.ne.s32.totalorder %s48, %s49
      %p60 = scmp.eq.s32.totalorder %s26, 0
      %p61 = por %p59, %p60
      %p62 = scmp.ne.s32.totalorder %s48, %s49
      %p63 = scmp.eq.s32.totalorder %s27, 1
      %p64 = por %p62, %p63
      %p66 = scmp.ne.s32.totalorder %s49, %s65
      %p67 = scmp.eq.s32.totalorder %s27, 0
      %p68 = por %p66, %p67
      %s69 = ssub.s32 %s28, %s40
      %s70 = ssub.s32 %s29, %s36
      %s71 = sor.u32 %s69, %s70
      %p72 = scmp.eq.s32.totalorder %s71, 0
      %s74 = sadd.s32 %s73, 1
      %s75 = scalar_select %p72, %s73, %s74
      %p78 = pneg %p72
      %p79 = scmp.eq.s32.totalorder %s21, 1
      %p80 = por %p78, %p79
      %p81 = scmp.ne.s32.totalorder %s73, %s76
      %p82 = scmp.eq.s32.totalorder %s21, 0
      %p83 = por %p81, %p82
      %p84 = scmp.ne.s32.totalorder %s73, %s76
      %p85 = scmp.eq.s32.totalorder %s26, 1
      %p86 = por %p84, %p85
      %p87 = scmp.ne.s32.totalorder %s76, %s77
      %p88 = scmp.eq.s32.totalorder %s26, 0
      %p89 = por %p87, %p88
      %p90 = scmp.ne.s32.totalorder %s76, %s77
      %p91 = scmp.eq.s32.totalorder %s27, 1
      %p92 = por %p90, %p91
      %p94 = scmp.ne.s32.totalorder %s77, %s93
      %p95 = scmp.eq.s32.totalorder %s27, 0
      %p96 = por %p94, %p95
      %s98 = sadd.s32 %s97, 1
      %p101 = scmp.eq.s32.totalorder %s21, 1
      %p102 = scmp.ne.s32.totalorder %s97, %s99
      %p103 = scmp.eq.s32.totalorder %s21, 0
      %p104 = por %p102, %p103
      %p105 = scmp.ne.s32.totalorder %s97, %s99
      %p106 = scmp.eq.s32.totalorder %s26, 1
      %p107 = por %p105, %p106
      %p108 = scmp.ne.s32.totalorder %s99, %s100
      %p109 = scmp.eq.s32.totalorder %s26, 0
      %p110 = por %p108, %p109
      %p111 = scmp.ne.s32.totalorder %s99, %s100
      %p112 = scmp.eq.s32.totalorder %s27, 1
      %p113 = por %p111, %p112
      %p115 = scmp.ne.s32.totalorder %s100, %s114
      %p116 = scmp.eq.s32.totalorder %s27, 0
      %p117 = por %p115, %p116
      %s119 = sadd.s32 %s118, 1
      %p122 = scmp.eq.s32.totalorder %s21, 1
      %p123 = scmp.ne.s32.totalorder %s118, %s120
      %p124 = scmp.eq.s32.totalorder %s21, 0
      %p125 = por %p123, %p124
      %p126 = scmp.ne.s32.totalorder %s118, %s120
      %p127 = scmp.eq.s32.totalorder %s26, 1
      %p128 = por %p126, %p127
      %p129 = scmp.ne.s32.totalorder %s120, %s121
      %p130 = scmp.eq.s32.totalorder %s26, 0
      %p131 = por %p129, %p130
      %p132 = scmp.ne.s32.totalorder %s120, %s121
      %p133 = scmp.eq.s32.totalorder %s27, 1
      %p134 = por %p132, %p133
      %p136 = scmp.ne.s32.totalorder %s121, %s135
      %p137 = scmp.eq.s32.totalorder %s27, 0
      %p138 = por %p136, %p137
      %s140 = sadd.s32 %s139, 1
      %p143 = scmp.eq.s32.totalorder %s21, 1
      %p144 = scmp.ne.s32.totalorder %s139, %s141
      %p145 = scmp.eq.s32.totalorder %s21, 0
      %p146 = por %p144, %p145
      %p147 = scmp.ne.s32.totalorder %s139, %s141
      %p148 = scmp.eq.s32.totalorder %s26, 1
      %p149 = por %p147, %p148
      %p150 = scmp.ne.s32.totalorder %s141, %s142
      %p151 = scmp.eq.s32.totalorder %s26, 0
      %p152 = por %p150, %p151
      %p153 = scmp.ne.s32.totalorder %s141, %s142
      %p154 = scmp.eq.s32.totalorder %s27, 1
      %p155 = por %p153, %p154
      %p157 = scmp.ne.s32.totalorder %s142, %s156
      %p158 = scmp.eq.s32.totalorder %s27, 0
      %p159 = por %p157, %p158
      %s161 = sadd.s32 %s160, 1
      %p164 = scmp.eq.s32.totalorder %s21, 1
      %p165 = scmp.ne.s32.totalorder %s160, %s162
      %p166 = scmp.eq.s32.totalorder %s21, 0
      %p167 = por %p165, %p166
      %p168 = scmp.ne.s32.totalorder %s160, %s162
      %p169 = scmp.eq.s32.totalorder %s26, 1
      %p170 = por %p168, %p169
      %p171 = scmp.ne.s32.totalorder %s162, %s163
      %p172 = scmp.eq.s32.totalorder %s26, 0
      %p173 = por %p171, %p172
      %p174 = scmp.ne.s32.totalorder %s162, %s163
      %p175 = scmp.eq.s32.totalorder %s27, 1
      %p176 = por %p174, %p175
      %p178 = scmp.ne.s32.totalorder %s163, %s177
      %p179 = scmp.eq.s32.totalorder %s27, 0
      %p180 = por %p178, %p179
      %s182 = sadd.s32 %s181, 1
      %p185 = scmp.eq.s32.totalorder %s21, 1
      %p186 = scmp.ne.s32.totalorder %s181, %s183
      %p187 = scmp.eq.s32.totalorder %s21, 0
      %p188 = por %p186, %p187
      %p189 = scmp.ne.s32.totalorder %s181, %s183
      %p190 = scmp.eq.s32.totalorder %s26, 1
      %p191 = por %p189, %p190
      %p192 = scmp.ne.s32.totalorder %s183, %s184
      %p193 = scmp.eq.s32.totalorder %s26, 0
      %p194 = por %p192, %p193
      %p195 = scmp.ne.s32.totalorder %s183, %s184
      %p196 = scmp.eq.s32.totalorder %s27, 1
      %p197 = por %p195, %p196
      %p199 = scmp.ne.s32.totalorder %s184, %s198
      %p200 = scmp.eq.s32.totalorder %s27, 0
      %p201 = por %p199, %p200
      %s203 = sadd.s32 %s202, 1
      %p206 = scmp.eq.s32.totalorder %s21, 1
      %p207 = scmp.ne.s32.totalorder %s202, %s204
      %p208 = scmp.eq.s32.totalorder %s21, 0
      %p209 = por %p207, %p208
      %p210 = scmp.ne.s32.totalorder %s202, %s204
      %p211 = scmp.eq.s32.totalorder %s26, 1
      %p212 = por %p210, %p211
      %p213 = scmp.ne.s32.totalorder %s204, %s205
      %p214 = scmp.eq.s32.totalorder %s26, 0
      %p215 = por %p213, %p214
      %p216 = scmp.ne.s32.totalorder %s204, %s205
      %p217 = scmp.eq.s32.totalorder %s27, 1
      %p218 = por %p216, %p217
      %p220 = scmp.ne.s32.totalorder %s205, %s219
      %p221 = scmp.eq.s32.totalorder %s27, 0
      %p222 = por %p220, %p221
      %s224 = sadd.s32 %s223, 1
      %p227 = scmp.eq.s32.totalorder %s21, 1
      %p228 = scmp.ne.s32.totalorder %s223, %s225
      %p229 = scmp.eq.s32.totalorder %s21, 0
      %p230 = por %p228, %p229
      %p231 = scmp.ne.s32.totalorder %s223, %s225
      %p232 = scmp.eq.s32.totalorder %s26, 1
      %p233 = por %p231, %p232
      %p234 = scmp.ne.s32.totalorder %s225, %s226
      %p235 = scmp.eq.s32.totalorder %s26, 0
      %p236 = por %p234, %p235
      %p237 = scmp.ne.s32.totalorder %s225, %s226
      %p238 = scmp.eq.s32.totalorder %s27, 1
      %p239 = por %p237, %p238
      %p241 = scmp.ne.s32.totalorder %s226, %s240
      %p242 = scmp.eq.s32.totalorder %s27, 0
      %p243 = por %p241, %p242
      %s244 = ssub.s32 %s28, %s40
      %s245 = ssub.s32 %s29, %s36
      %s246 = sor.u32 %s244, %s245
      %p247 = scmp.eq.s32.totalorder %s246, 0
      %s249 = sadd.s32 %s248, 1
      %s250 = scalar_select %p247, %s248, %s249
      %p253 = pneg %p247
      %p254 = scmp.eq.s32.totalorder %s21, 1
      %p255 = por %p253, %p254
      %p256 = scmp.ne.s32.totalorder %s248, %s251
      %p257 = scmp.eq.s32.totalorder %s21, 0
      %p258 = por %p256, %p257
      %p259 = scmp.ne.s32.totalorder %s248, %s251
      %p260 = scmp.eq.s32.totalorder %s26, 1
      %p261 = por %p259, %p260
      %p262 = scmp.ne.s32.totalorder %s251, %s252
      %p263 = scmp.eq.s32.totalorder %s26, 0
      %p264 = por %p262, %p263
      %p265 = scmp.ne.s32.totalorder %s251, %s252
      %p266 = scmp.eq.s32.totalorder %s27, 1
      %p267 = por %p265, %p266
      %p269 = scmp.ne.s32.totalorder %s252, %s268
      %p270 = scmp.eq.s32.totalorder %s27, 0
      %p271 = por %p269, %p270
      %p272 = scmp.le.s32.totalorder 1, %s21
      %p273 = scmp.lt.s32.totalorder %s21, 3
      %p274 = pnand %p272, %p273
      %p275 = pneg %p274
      // Predicated region
      $region9: #{tpu_custom_call.1} parent=5 // pred_check
        _
      $region10: #{tpu_custom_call.1} parent=5 // pred_check_branch
        %277 = sbr.rel (%p274) target = $region12
      $region11: #{tpu_custom_call.1} parent=5 // pred_region
        %s278 = ssub.s32 %s21, 1
        // Predicated region
        $region13: #{tpu_custom_call.1} parent=11 // pred_check
          %p279 = pneg %p110
        $region14: #{tpu_custom_call.1} parent=11 // pred_check_branch
          %281 = sbr.rel (%p279) target = $region16
        $region15: #{tpu_custom_call.1} parent=11 // pred_region
          _
        $region16: #{tpu_custom_call.1} parent=11 // pred_fallthru
          _
        // Predicated region
        $region17: #{tpu_custom_call.1} parent=11 // pred_check
          %p282 = pneg %p131
        $region18: #{tpu_custom_call.1} parent=11 // pred_check_branch
          %284 = sbr.rel (%p282) target = $region20
        $region19: #{tpu_custom_call.1} parent=11 // pred_region
          _
        $region20: #{tpu_custom_call.1} parent=11 // pred_fallthru
          _
        // Predicated region
        $region21: #{tpu_custom_call.1} parent=11 // pred_check
          %p285 = pneg %p152
        $region22: #{tpu_custom_call.1} parent=11 // pred_check_branch
          %287 = sbr.rel (%p285) target = $region24
        $region23: #{tpu_custom_call.1} parent=11 // pred_region
          _
        $region24: #{tpu_custom_call.1} parent=11 // pred_fallthru
          _
        // Predicated region
        $region25: #{tpu_custom_call.1} parent=11 // pred_check
          %p288 = pneg %p173
        $region26: #{tpu_custom_call.1} parent=11 // pred_check_branch
          %290 = sbr.rel (%p288) target = $region28
        $region27: #{tpu_custom_call.1} parent=11 // pred_region
          _
        $region28: #{tpu_custom_call.1} parent=11 // pred_fallthru
          _
        // Predicated region
        $region29: #{tpu_custom_call.1} parent=11 // pred_check
          %p291 = pneg %p194
        $region30: #{tpu_custom_call.1} parent=11 // pred_check_branch
          %293 = sbr.rel (%p291) target = $region32
        $region31: #{tpu_custom_call.1} parent=11 // pred_region
          _
        $region32: #{tpu_custom_call.1} parent=11 // pred_fallthru
          _
        // Predicated region
        $region33: #{tpu_custom_call.1} parent=11 // pred_check
          %p294 = pneg %p215
        $region34: #{tpu_custom_call.1} parent=11 // pred_check_branch
          %296 = sbr.rel (%p294) target = $region36
        $region35: #{tpu_custom_call.1} parent=11 // pred_region
          _
        $region36: #{tpu_custom_call.1} parent=11 // pred_fallthru
          _
        // Predicated region
        $region37: #{tpu_custom_call.1} parent=11 // pred_check
          %p297 = pneg %p236
        $region38: #{tpu_custom_call.1} parent=11 // pred_check_branch
          %299 = sbr.rel (%p297) target = $region40
        $region39: #{tpu_custom_call.1} parent=11 // pred_region
          _
        $region40: #{tpu_custom_call.1} parent=11 // pred_fallthru
          _
      $region12: #{tpu_custom_call.1} parent=5 // pred_fallthru
        _
      %p300 = scmp.lt.s32.totalorder %s21, 2
      // Predicated region
      $region41: #{tpu_custom_call.1} parent=5 // pred_check
        %p301 = pneg %p300
      $region42: #{tpu_custom_call.1} parent=5 // pred_check_branch
        %303 = sbr.rel (%p301) target = $region44
      $region43: #{tpu_custom_call.1} parent=5 // pred_region
        // Predicated region
        $region45: #{tpu_custom_call.1} parent=43 // pred_check
          %p304 = pneg %p55
        $region46: #{tpu_custom_call.1} parent=43 // pred_check_branch
          %306 = sbr.rel (%p304) target = $region48
        $region47: #{tpu_custom_call.1} parent=43 // pred_region
          %p307 = scmp.lt.s32.totalorder %s28, 1
          %s308 = scalar_select %p307, %s28, 1
          %p309 = scmp.lt.s32.totalorder %s29, 0
          %s310 = scalar_select %p309, %s29, 0
          %s311 = smul.addr %s310, 9
          %s312 = smul.addr %s308, 9
          %s313 = sadd.s32 %s311, %s312
          %s314 = smul.addr %s313, 2
          %s315 = scalar_lea.vmem %s0, %s314
        $region48: #{tpu_custom_call.1} parent=43 // pred_fallthru
          _
        // Predicated region
        $region49: #{tpu_custom_call.1} parent=43 // pred_check
          %p316 = pneg %p83
        $region50: #{tpu_custom_call.1} parent=43 // pred_check_branch
          %318 = sbr.rel (%p316) target = $region52
        $region51: #{tpu_custom_call.1} parent=43 // pred_region
          %s319 = sand.u32 %s73, 1
          %s320 = scalar_lea.sflag [#allocation3], %s319
          %s321 = sand.u32 %s73, 1
          %s322 = smul.addr %s321, 512
          %s323 = scalar_lea.vmem [#allocation2], %s322
          %s324 = smul.u32 8, %s29
          %s326 = ssub.s32 8192, 8192
          %327 = vsyncadd %s320, %s326
          %s328 = smul.addr %s28, 64
          %s329 = sadd.s32 %s324, %s328
          %s330 = smul.addr %s329, 128
          %s331 = scalar_lea.hbm %s1, %s330
          %s332 = sshll.u32 %s323, 4
          %s333 = int_to_ptr.vmem [resolvable:$true] %s332
          %338 = dma.hbm_to_vmem [thread:$0]  %s331, 8192, %s333, %s320, 1024, 1024, 64
        $region52: #{tpu_custom_call.1} parent=43 // pred_fallthru
          _
      $region44: #{tpu_custom_call.1} parent=5 // pred_fallthru
        _
      %p339 = scmp.le.s32.totalorder 1, %s21
      %p340 = scmp.lt.s32.totalorder %s21, 3
      %p341 = pnand %p339, %p340
      %p342 = pneg %p341
      // Predicated region
      $region53: #{tpu_custom_call.1} parent=5 // pred_check
        _
      $region54: #{tpu_custom_call.1} parent=5 // pred_check_branch
        %344 = sbr.rel (%p341) target = $region56
      $region55: #{tpu_custom_call.1} parent=5 // pred_region
        %s345 = ssub.s32 %s21, 1
        %s346 = sand.u32 %s76, 1
        %s347 = scalar_lea.sflag [#allocation3], %s346
        %s348 = sand.u32 %s76, 1
        %s349 = smul.addr %s348, 512
        %s350 = scalar_lea.vmem [#allocation2], %s349
        // Predicated region
        $region57: #{tpu_custom_call.1} parent=55 // pred_check
          %p351 = pneg %p89
        $region58: #{tpu_custom_call.1} parent=55 // pred_check_branch
          %353 = sbr.rel (%p351) target = $region60
        $region59: #{tpu_custom_call.1} parent=55 // pred_region
          %354 = dma.done %s347, 8192
        $region60: #{tpu_custom_call.1} parent=55 // pred_fallthru
          _
        %p355 = scmp.lt.s32.totalorder %s30, 1
        %s356 = scalar_select %p355, %s30, 1
        %p357 = scmp.lt.s32.totalorder %s31, 0
        %s358 = scalar_select %p357, %s31, 0
        %s359 = smul.addr %s358, 9
        %s360 = smul.addr %s356, 9
        %s361 = sadd.s32 %s359, %s360
        %s362 = smul.addr %s361, 2
        %s363 = scalar_lea.vmem %s0, %s362
        %p364 = pneg %p61
        %p365 = pneg %p58
        %s366 = sand.u32 %s76, 1
        %s367 = scalar_lea.sflag [#allocation3], %s366
        %s368 = sand.u32 %s76, 1
        %s369 = smul.addr %s368, 512
        %s370 = scalar_lea.vmem [#allocation2], %s369
        %p371 = pneg %p89
        %p372 = pneg %p86
        %p373 = pneg %p110
        %p374 = pneg %p107
        %p375 = pneg %p131
        %p376 = pneg %p128
        %p377 = pneg %p152
        %p378 = pneg %p149
        %p379 = pneg %p173
        %p380 = pneg %p170
        %p381 = pneg %p194
        %p382 = pneg %p191
        %p383 = pneg %p215
        %p384 = pneg %p212
        %p385 = pneg %p236
        %p386 = pneg %p233
        %p387 = pneg %p264
        %p388 = pneg %p261
        %s389 = sand.u32 %s251, 1
        %s390 = scalar_lea.sflag [#allocation4], %s389
        %s391 = sand.u32 %s251, 1
        %s392 = smul.addr %s391, 16
        %s393 = scalar_lea.vmem [#allocation5], %s392
        %p394 = scmp.lt.s32.totalorder %s30, 1
        %s395 = scalar_select %p394, %s30, 1
        %p396 = scmp.lt.s32.totalorder %s31, 0
        %s397 = scalar_select %p396, %s31, 0
        %s398 = smul.addr %s397, 9
        %s399 = smul.addr %s395, 9
        %s400 = sadd.s32 %s398, %s399
        %s401 = smul.addr %s400, 2
        %s402 = scalar_lea.vmem %s0, %s401
        %s403 = smul.u32 8, %s31
        %s404 = smul.u32 8, %s31
        %v406 = vld [vmem:[%s402] sm:$0xff]
        %v407 = vld [vmem:[%s402 + $0x8] sm:$0xff]
        %v408 = vld [vmem:[%s402 + $0x10] sm:$0x3]
        %v409 = vld [vmem:[%s2] sm:$0xff]
        %v410 = vld [vmem:[%s3] sm:$0xff]
        %v412 = vcombine.high %v409, %v409
        %v414 = vunpack.c.l.s4 1966171168
        %v415 = vunpack.c.0.s8 %v414
        %v416 = vlaneseq
        %v417 = vshrl.u32 %v416, 7
        %v418 = vsub.s32 %v415, %v417
        %v419 = vrot.slane %v409, %v418
        %v421 = vunpack.c.l.s4 1966171168
        %v422 = vunpack.c.0.s8 %v421
        %v423 = vlaneseq
        %v424 = vshrl.u32 %v423, 7
        %v425 = vsub.s32 %v422, %v424
        %v426 = vrot.slane %v412, %v425
        %v427 = vcombine.high %v419, %v419
        %v428 = vcombine.high %v426, %v426
        %v430 = vunpack.c.l.s4 1966171168
        %v431 = vunpack.c.0.s8 %v430
        %v432 = vlaneseq
        %v433 = vshrl.u32 %v432, 7
        %v434 = vsub.s32 %v431, %v433
        %v435 = vrot.slane %v419, %v434
        %v437 = vunpack.c.l.s4 1966171168
        %v438 = vunpack.c.0.s8 %v437
        %v439 = vlaneseq
        %v440 = vshrl.u32 %v439, 7
        %v441 = vsub.s32 %v438, %v440
        %v442 = vrot.slane %v426, %v441
        %v444 = vunpack.c.l.s4 1966171168
        %v445 = vunpack.c.0.s8 %v444
        %v446 = vlaneseq
        %v447 = vshrl.u32 %v446, 7
        %v448 = vsub.s32 %v445, %v447
        %v449 = vrot.slane %v427, %v448
        %v451 = vunpack.c.l.s4 1966171168
        %v452 = vunpack.c.0.s8 %v451
        %v453 = vlaneseq
        %v454 = vshrl.u32 %v453, 7
        %v455 = vsub.s32 %v452, %v454
        %v456 = vrot.slane %v428, %v455
        %v457 = vcombine.high %v435, %v435
        %v458 = vcombine.high %v442, %v442
        %v459 = vcombine.high %v449, %v449
        %v460 = vcombine.high %v456, %v456
        %v462 = vpack.i.b16 %v435, %v435
        %v464 = vlaneseq
        %v465 = vshrl.u32 %v464, 7
        %v466 = vsub.s32 0, %v465
        %v467 = vrot.slane %v462, %v466
        %v469 = vpack.i.b16 %v449, %v449
        %v471 = vlaneseq
        %v472 = vshrl.u32 %v471, 7
        %v473 = vsub.s32 0, %v472
        %v474 = vrot.slane %v469, %v473
        %v476 = vpack.i.b16 %v457, %v457
        %v478 = vlaneseq
        %v479 = vshrl.u32 %v478, 7
        %v480 = vsub.s32 0, %v479
        %v481 = vrot.slane %v476, %v480
        %v483 = vpack.i.b16 %v459, %v459
        %v485 = vlaneseq
        %v486 = vshrl.u32 %v485, 7
        %v487 = vsub.s32 0, %v486
        %v488 = vrot.slane %v483, %v487
        %v490 = vpack.i.b16 %v442, %v442
        %v492 = vlaneseq
        %v493 = vshrl.u32 %v492, 7
        %v494 = vsub.s32 0, %v493
        %v495 = vrot.slane %v490, %v494
        %v497 = vpack.i.b16 %v456, %v456
        %v499 = vlaneseq
        %v500 = vshrl.u32 %v499, 7
        %v501 = vsub.s32 0, %v500
        %v502 = vrot.slane %v497, %v501
        %v504 = vpack.i.b16 %v458, %v458
        %v506 = vlaneseq
        %v507 = vshrl.u32 %v506, 7
        %v508 = vsub.s32 0, %v507
        %v509 = vrot.slane %v504, %v508
        %v511 = vpack.i.b16 %v460, %v460
        %v513 = vlaneseq
        %v514 = vshrl.u32 %v513, 7
        %v515 = vsub.s32 0, %v514
        %v516 = vrot.slane %v511, %v515
        %v525 = vcombine.low %v467, %v474
        %v526 = vcombine.low %v481, %v488
        %v528 = vunpack.c.l.s4 1983009808
        %v529 = vunpack.c.0.s8 %v528
        %v530 = vlaneseq
        %v531 = vshrl.u32 %v530, 7
        %v532 = vsub.s32 %v529, %v531
        %v533 = vrot.slane %v525, %v532
        %v535 = vunpack.c.l.s4 1983009808
        %v536 = vunpack.c.0.s8 %v535
        %v537 = vlaneseq
        %v538 = vshrl.u32 %v537, 7
        %v539 = vsub.s32 %v536, %v538
        %v540 = vrot.slane %v526, %v539
        %v541 = vcombine.low %v533, %v540
        %v542 = vcombine.low %v495, %v502
        %v543 = vcombine.low %v509, %v516
        %v545 = vunpack.c.l.s4 1983009808
        %v546 = vunpack.c.0.s8 %v545
        %v547 = vlaneseq
        %v548 = vshrl.u32 %v547, 7
        %v549 = vsub.s32 %v546, %v548
        %v550 = vrot.slane %v542, %v549
        %v552 = vunpack.c.l.s4 1983009808
        %v553 = vunpack.c.0.s8 %v552
        %v554 = vlaneseq
        %v555 = vshrl.u32 %v554, 7
        %v556 = vsub.s32 %v553, %v555
        %v557 = vrot.slane %v543, %v556
        %v558 = vcombine.low %v550, %v557
        %v561 = vmul.bf16 %v406, %v541
        %v562 = vmul.bf16 %v407, %v558
        %v564 = vcombine.high %v410, %v410
        %v566 = vunpack.c.l.s4 1966171168
        %v567 = vunpack.c.0.s8 %v566
        %v568 = vlaneseq
        %v569 = vshrl.u32 %v568, 7
        %v570 = vsub.s32 %v567, %v569
        %v571 = vrot.slane %v410, %v570
        %v573 = vunpack.c.l.s4 1966171168
        %v574 = vunpack.c.0.s8 %v573
        %v575 = vlaneseq
        %v576 = vshrl.u32 %v575, 7
        %v577 = vsub.s32 %v574, %v576
        %v578 = vrot.slane %v564, %v577
        %v579 = vcombine.high %v571, %v571
        %v580 = vcombine.high %v578, %v578
        %v582 = vunpack.c.l.s4 1966171168
        %v583 = vunpack.c.0.s8 %v582
        %v584 = vlaneseq
        %v585 = vshrl.u32 %v584, 7
        %v586 = vsub.s32 %v583, %v585
        %v587 = vrot.slane %v571, %v586
        %v589 = vunpack.c.l.s4 1966171168
        %v590 = vunpack.c.0.s8 %v589
        %v591 = vlaneseq
        %v592 = vshrl.u32 %v591, 7
        %v593 = vsub.s32 %v590, %v592
        %v594 = vrot.slane %v578, %v593
        %v596 = vunpack.c.l.s4 1966171168
        %v597 = vunpack.c.0.s8 %v596
        %v598 = vlaneseq
        %v599 = vshrl.u32 %v598, 7
        %v600 = vsub.s32 %v597, %v599
        %v601 = vrot.slane %v579, %v600
        %v603 = vunpack.c.l.s4 1966171168
        %v604 = vunpack.c.0.s8 %v603
        %v605 = vlaneseq
        %v606 = vshrl.u32 %v605, 7
        %v607 = vsub.s32 %v604, %v606
        %v608 = vrot.slane %v580, %v607
        %v609 = vcombine.high %v587, %v587
        %v610 = vcombine.high %v594, %v594
        %v611 = vcombine.high %v601, %v601
        %v612 = vcombine.high %v608, %v608
        %v614 = vpack.i.b16 %v587, %v587
        %v616 = vlaneseq
        %v617 = vshrl.u32 %v616, 7
        %v618 = vsub.s32 0, %v617
        %v619 = vrot.slane %v614, %v618
        %v621 = vpack.i.b16 %v601, %v601
        %v623 = vlaneseq
        %v624 = vshrl.u32 %v623, 7
        %v625 = vsub.s32 0, %v624
        %v626 = vrot.slane %v621, %v625
        %v628 = vpack.i.b16 %v609, %v609
        %v630 = vlaneseq
        %v631 = vshrl.u32 %v630, 7
        %v632 = vsub.s32 0, %v631
        %v633 = vrot.slane %v628, %v632
        %v635 = vpack.i.b16 %v611, %v611
        %v637 = vlaneseq
        %v638 = vshrl.u32 %v637, 7
        %v639 = vsub.s32 0, %v638
        %v640 = vrot.slane %v635, %v639
        %v642 = vpack.i.b16 %v594, %v594
        %v644 = vlaneseq
        %v645 = vshrl.u32 %v644, 7
        %v646 = vsub.s32 0, %v645
        %v647 = vrot.slane %v642, %v646
        %v649 = vpack.i.b16 %v608, %v608
        %v651 = vlaneseq
        %v652 = vshrl.u32 %v651, 7
        %v653 = vsub.s32 0, %v652
        %v654 = vrot.slane %v649, %v653
        %v656 = vpack.i.b16 %v610, %v610
        %v658 = vlaneseq
        %v659 = vshrl.u32 %v658, 7
        %v660 = vsub.s32 0, %v659
        %v661 = vrot.slane %v656, %v660
        %v663 = vpack.i.b16 %v612, %v612
        %v665 = vlaneseq
        %v666 = vshrl.u32 %v665, 7
        %v667 = vsub.s32 0, %v666
        %v668 = vrot.slane %v663, %v667
        %v677 = vcombine.low %v619, %v626
        %v678 = vcombine.low %v633, %v640
        %v680 = vunpack.c.l.s4 1983009808
        %v681 = vunpack.c.0.s8 %v680
        %v682 = vlaneseq
        %v683 = vshrl.u32 %v682, 7
        %v684 = vsub.s32 %v681, %v683
        %v685 = vrot.slane %v677, %v684
        %v687 = vunpack.c.l.s4 1983009808
        %v688 = vunpack.c.0.s8 %v687
        %v689 = vlaneseq
        %v690 = vshrl.u32 %v689, 7
        %v691 = vsub.s32 %v688, %v690
        %v692 = vrot.slane %v678, %v691
        %v693 = vcombine.low %v685, %v692
        %v694 = vcombine.low %v647, %v654
        %v695 = vcombine.low %v661, %v668
        %v697 = vunpack.c.l.s4 1983009808
        %v698 = vunpack.c.0.s8 %v697
        %v699 = vlaneseq
        %v700 = vshrl.u32 %v699, 7
        %v701 = vsub.s32 %v698, %v700
        %v702 = vrot.slane %v694, %v701
        %v704 = vunpack.c.l.s4 1983009808
        %v705 = vunpack.c.0.s8 %v704
        %v706 = vlaneseq
        %v707 = vshrl.u32 %v706, 7
        %v708 = vsub.s32 %v705, %v707
        %v709 = vrot.slane %v695, %v708
        %v710 = vcombine.low %v702, %v709
        %711 = vrot.lane.b32.xlu0 %v693, 2
        %v712 = vpop.permute.xlu0 %711
        %713 = vrot.lane.b32.xlu0 %v710, 2
        %v714 = vpop.permute.xlu0 %713
        %v715 = vrot.slane %v712, 6
        %v716 = vrot.slane %v714, 6
        %vm717 = vcmask 15360
        %v718 = vsel %vm717, %v715, %v712
        %vm719 = vcmask 1041408
        %v720 = vsel %vm719, %v715, %v716
        %v721 = vsel %vm717, %v720, %v714
        %v725 = vmul.bf16 %v406, %v718
        %v726 = vmul.bf16 %v407, %v721
        %v727 = vmul.bf16 %v408, %v716
        %728 = vrot.lane.b32.xlu0 %v541, 32
        %v729 = vpop.permute.xlu0 %728
        %730 = vrot.lane.b32.xlu0 %v558, 32
        %v731 = vpop.permute.xlu0 %730
        %v732 = vrot.slane %v729, 6
        %v733 = vrot.slane %v731, 6
        %vm734 = vcmask 261120
        %v735 = vsel %vm734, %v732, %v729
        %v736 = vsel %vm719, %v732, %v733
        %v737 = vsel %vm734, %v736, %v731
        %v741 = vmul.bf16 %v406, %v735
        %v742 = vmul.bf16 %v407, %v737
        %v743 = vmul.bf16 %v408, %v733
        %744 = vrot.lane.b32.xlu0 %v693, 34
        %v745 = vpop.permute.xlu0 %744
        %746 = vrot.lane.b32.xlu0 %v710, 34
        %v747 = vpop.permute.xlu0 %746
        %v748 = vrot.slane %v745, 6
        %v749 = vrot.slane %v747, 6
        %vm750 = vcmask 277504
        %v751 = vsel %vm750, %v748, %v745
        %v752 = vsel %vm719, %v748, %v749
        %v753 = vsel %vm750, %v752, %v747
        %v757 = vmul.bf16 %v406, %v751
        %v758 = vmul.bf16 %v407, %v753
        %v759 = vmul.bf16 %v408, %v749
        %760 = vrot.lane.b32.xlu0 %v541, 64
        %v761 = vpop.permute.xlu0 %760
        %762 = vrot.lane.b32.xlu0 %v558, 64
        %v763 = vpop.permute.xlu0 %762
        %v764 = vrot.slane %v761, 6
        %v765 = vrot.slane %v763, 6
        %vm766 = vcmask 523264
        %v767 = vsel %vm766, %v764, %v761
        %v768 = vsel %vm719, %v764, %v765
        %v769 = vsel %vm766, %v768, %v763
        %v773 = vmul.bf16 %v406, %v767
        %v774 = vmul.bf16 %v407, %v769
        %v775 = vmul.bf16 %v408, %v765
        %776 = vrot.lane.b32.xlu0 %v693, 66
        %v777 = vpop.permute.xlu0 %776
        %778 = vrot.lane.b32.xlu0 %v710, 66
        %v779 = vpop.permute.xlu0 %778
        %v780 = vrot.slane %v777, 6
        %v781 = vrot.slane %v779, 6
        %vm782 = vcmask 539648
        %v783 = vsel %vm782, %v780, %v777
        %v784 = vsel %vm719, %v780, %v781
        %v785 = vsel %vm782, %v784, %v779
        %v789 = vmul.bf16 %v406, %v783
        %v790 = vmul.bf16 %v407, %v785
        %v791 = vmul.bf16 %v408, %v781
        %v794 = vcombine.high %v561, %v561
        %v796 = vunpack.c.l.s4 1983009808
        %v797 = vunpack.c.0.s8 %v796
        %v798 = vlaneseq
        %v799 = vshrl.u32 %v798, 7
        %v800 = vsub.s32 %v797, %v799
        %v801 = vrot.slane %v561, %v800
        %v803 = vunpack.c.l.s4 1983009808
        %v804 = vunpack.c.0.s8 %v803
        %v805 = vlaneseq
        %v806 = vshrl.u32 %v805, 7
        %v807 = vsub.s32 %v804, %v806
        %v808 = vrot.slane %v794, %v807
        %v809 = vcombine.high %v801, %v801
        %v810 = vcombine.high %v808, %v808
        %v811 = vcombine.high %v562, %v562
        %v813 = vunpack.c.l.s4 1983009808
        %v814 = vunpack.c.0.s8 %v813
        %v815 = vlaneseq
        %v816 = vshrl.u32 %v815, 7
        %v817 = vsub.s32 %v814, %v816
        %v818 = vrot.slane %v562, %v817
        %v820 = vunpack.c.l.s4 1983009808
        %v821 = vunpack.c.0.s8 %v820
        %v822 = vlaneseq
        %v823 = vshrl.u32 %v822, 7
        %v824 = vsub.s32 %v821, %v823
        %v825 = vrot.slane %v811, %v824
        %v826 = vcombine.high %v818, %v818
        %v827 = vcombine.high %v825, %v825
        %v831 = vcombine.low %v406, %v406
        %v833 = vunpack.c.l.s4 1983009808
        %v834 = vunpack.c.0.s8 %v833
        %v835 = vlaneseq
        %v836 = vshrl.u32 %v835, 7
        %v837 = vsub.s32 %v834, %v836
        %v838 = vrot.slane %v831, %v837
        %v840 = vunpack.c.l.s4 1983009808
        %v841 = vunpack.c.0.s8 %v840
        %v842 = vlaneseq
        %v843 = vshrl.u32 %v842, 7
        %v844 = vsub.s32 %v841, %v843
        %v845 = vrot.slane %v406, %v844
        %v846 = vcombine.high %v838, %v838
        %v847 = vcombine.high %v845, %v845
        %v848 = vcombine.low %v407, %v407
        %v850 = vunpack.c.l.s4 1983009808
        %v851 = vunpack.c.0.s8 %v850
        %v852 = vlaneseq
        %v853 = vshrl.u32 %v852, 7
        %v854 = vsub.s32 %v851, %v853
        %v855 = vrot.slane %v848, %v854
        %v857 = vunpack.c.l.s4 1983009808
        %v858 = vunpack.c.0.s8 %v857
        %v859 = vlaneseq
        %v860 = vshrl.u32 %v859, 7
        %v861 = vsub.s32 %v858, %v860
        %v862 = vrot.slane %v407, %v861
        %v863 = vcombine.high %v855, %v855
        %v864 = vcombine.high %v862, %v862
        %v865 = vcombine.low %v408, %v408
        %v867 = vunpack.c.l.s4 1983009808
        %v868 = vunpack.c.0.s8 %v867
        %v869 = vlaneseq
        %v870 = vshrl.u32 %v869, 7
        %v871 = vsub.s32 %v868, %v870
        %v872 = vrot.slane %v865, %v871
        %v874 = vunpack.c.l.s4 1983009808
        %v875 = vunpack.c.0.s8 %v874
        %v876 = vlaneseq
        %v877 = vshrl.u32 %v876, 7
        %v878 = vsub.s32 %v875, %v877
        %v879 = vrot.slane %v408, %v878
        %880 = vrot.lane.b32.xlu0 %v838, 127
        %v881 = vpop.permute.xlu0 %880
        %882 = vrot.lane.b32.xlu0 %v846, 127
        %v883 = vpop.permute.xlu0 %882
        %884 = vrot.lane.b32.xlu0 %v845, 127
        %v885 = vpop.permute.xlu0 %884
        %886 = vrot.lane.b32.xlu0 %v847, 127
        %v887 = vpop.permute.xlu0 %886
        %888 = vrot.lane.b32.xlu0 %v855, 127
        %v889 = vpop.permute.xlu0 %888
        %890 = vrot.lane.b32.xlu0 %v863, 127
        %v891 = vpop.permute.xlu0 %890
        %892 = vrot.lane.b32.xlu0 %v862, 127
        %v893 = vpop.permute.xlu0 %892
        %894 = vrot.lane.b32.xlu0 %v864, 127
        %v895 = vpop.permute.xlu0 %894
        %896 = vrot.lane.b32.xlu0 %v872, 127
        %v897 = vpop.permute.xlu0 %896
        %vm898 = vcmask 1039360
        %v899 = vsel %vm898, %v881, %v883
        %v900 = vsel %vm898, %v883, %v885
        %v901 = vsel %vm898, %v885, %v887
        %v902 = vsel %vm898, %v887, %v889
        %v903 = vsel %vm898, %v889, %v891
        %v904 = vsel %vm898, %v891, %v893
        %v905 = vsel %vm898, %v893, %v895
        %v906 = vsel %vm898, %v895, %v897
        %v910 = vcombine.high %v725, %v725
        %v912 = vunpack.c.l.s4 1983009808
        %v913 = vunpack.c.0.s8 %v912
        %v914 = vlaneseq
        %v915 = vshrl.u32 %v914, 7
        %v916 = vsub.s32 %v913, %v915
        %v917 = vrot.slane %v725, %v916
        %v919 = vunpack.c.l.s4 1983009808
        %v920 = vunpack.c.0.s8 %v919
        %v921 = vlaneseq
        %v922 = vshrl.u32 %v921, 7
        %v923 = vsub.s32 %v920, %v922
        %v924 = vrot.slane %v910, %v923
        %v925 = vcombine.low %v917, %v917
        %v926 = vcombine.low %v924, %v924
        %v927 = vcombine.high %v726, %v726
        %v929 = vunpack.c.l.s4 1983009808
        %v930 = vunpack.c.0.s8 %v929
        %v931 = vlaneseq
        %v932 = vshrl.u32 %v931, 7
        %v933 = vsub.s32 %v930, %v932
        %v934 = vrot.slane %v726, %v933
        %v936 = vunpack.c.l.s4 1983009808
        %v937 = vunpack.c.0.s8 %v936
        %v938 = vlaneseq
        %v939 = vshrl.u32 %v938, 7
        %v940 = vsub.s32 %v937, %v939
        %v941 = vrot.slane %v927, %v940
        %v942 = vcombine.low %v934, %v934
        %v943 = vcombine.low %v941, %v941
        %v945 = vunpack.c.l.s4 1983009808
        %v946 = vunpack.c.0.s8 %v945
        %v947 = vlaneseq
        %v948 = vshrl.u32 %v947, 7
        %v949 = vsub.s32 %v946, %v948
        %v950 = vrot.slane %v727, %v949
        %v951 = vcombine.low %v950, %v950
        %952 = vrot.lane.b32.xlu0 %v925, 126
        %v953 = vpop.permute.xlu0 %952
        %954 = vrot.lane.b32.xlu0 %v917, 126
        %v955 = vpop.permute.xlu0 %954
        %956 = vrot.lane.b32.xlu0 %v926, 126
        %v957 = vpop.permute.xlu0 %956
        %958 = vrot.lane.b32.xlu0 %v924, 126
        %v959 = vpop.permute.xlu0 %958
        %960 = vrot.lane.b32.xlu0 %v942, 126
        %v961 = vpop.permute.xlu0 %960
        %962 = vrot.lane.b32.xlu0 %v934, 126
        %v963 = vpop.permute.xlu0 %962
        %964 = vrot.lane.b32.xlu0 %v943, 126
        %v965 = vpop.permute.xlu0 %964
        %966 = vrot.lane.b32.xlu0 %v941, 126
        %v967 = vpop.permute.xlu0 %966
        %968 = vrot.lane.b32.xlu0 %v951, 126
        %v969 = vpop.permute.xlu0 %968
        %vm970 = vcmask 1031168
        %v971 = vsel %vm970, %v953, %v955
        %v972 = vsel %vm970, %v955, %v957
        %v973 = vsel %vm970, %v957, %v959
        %v974 = vsel %vm970, %v959, %v961
        %v975 = vsel %vm970, %v961, %v963
        %v976 = vsel %vm970, %v963, %v965
        %v977 = vsel %vm970, %v965, %v967
        %v978 = vsel %vm970, %v967, %v969
        %v982 = vcombine.low %v741, %v741
        %v984 = vunpack.c.l.s4 1983009808
        %v985 = vunpack.c.0.s8 %v984
        %v986 = vlaneseq
        %v987 = vshrl.u32 %v986, 7
        %v988 = vsub.s32 %v985, %v987
        %v989 = vrot.slane %v982, %v988
        %v991 = vunpack.c.l.s4 1983009808
        %v992 = vunpack.c.0.s8 %v991
        %v993 = vlaneseq
        %v994 = vshrl.u32 %v993, 7
        %v995 = vsub.s32 %v992, %v994
        %v996 = vrot.slane %v741, %v995
        %v997 = vcombine.low %v989, %v989
        %v998 = vcombine.low %v996, %v996
        %v999 = vcombine.low %v742, %v742
        %v1001 = vunpack.c.l.s4 1983009808
        %v1002 = vunpack.c.0.s8 %v1001
        %v1003 = vlaneseq
        %v1004 = vshrl.u32 %v1003, 7
        %v1005 = vsub.s32 %v1002, %v1004
        %v1006 = vrot.slane %v999, %v1005
        %v1008 = vunpack.c.l.s4 1983009808
        %v1009 = vunpack.c.0.s8 %v1008
        %v1010 = vlaneseq
        %v1011 = vshrl.u32 %v1010, 7
        %v1012 = vsub.s32 %v1009, %v1011
        %v1013 = vrot.slane %v742, %v1012
        %v1014 = vcombine.low %v1006, %v1006
        %v1015 = vcombine.low %v1013, %v1013
        %v1016 = vcombine.low %v743, %v743
        %v1018 = vunpack.c.l.s4 1983009808
        %v1019 = vunpack.c.0.s8 %v1018
        %v1020 = vlaneseq
        %v1021 = vshrl.u32 %v1020, 7
        %v1022 = vsub.s32 %v1019, %v1021
        %v1023 = vrot.slane %v1016, %v1022
        %v1024 = vcombine.low %v1023, %v1023
        %1025 = vrot.lane.b32.xlu0 %v997, 96
        %v1026 = vpop.permute.xlu0 %1025
        %1027 = vrot.lane.b32.xlu0 %v989, 96
        %v1028 = vpop.permute.xlu0 %1027
        %1029 = vrot.lane.b32.xlu0 %v998, 96
        %v1030 = vpop.permute.xlu0 %1029
        %1031 = vrot.lane.b32.xlu0 %v996, 96
        %v1032 = vpop.permute.xlu0 %1031
        %1033 = vrot.lane.b32.xlu0 %v1014, 96
        %v1034 = vpop.permute.xlu0 %1033
        %1035 = vrot.lane.b32.xlu0 %v1006, 96
        %v1036 = vpop.permute.xlu0 %1035
        %1037 = vrot.lane.b32.xlu0 %v1015, 96
        %v1038 = vpop.permute.xlu0 %1037
        %1039 = vrot.lane.b32.xlu0 %v1013, 96
        %v1040 = vpop.permute.xlu0 %1039
        %1041 = vrot.lane.b32.xlu0 %v1024, 96
        %v1042 = vpop.permute.xlu0 %1041
        %vm1043 = vcmask 785408
        %v1044 = vsel %vm1043, %v1026, %v1028
        %v1045 = vsel %vm1043, %v1028, %v1030
        %v1046 = vsel %vm1043, %v1030, %v1032
        %v1047 = vsel %vm1043, %v1032, %v1034
        %v1048 = vsel %vm1043, %v1034, %v1036
        %v1049 = vsel %vm1043, %v1036, %v1038
        %v1050 = vsel %vm1043, %v1038, %v1040
        %v1051 = vsel %vm1043, %v1040, %v1042
        %v1052 = vcombine.high %v406, %v406
        %v1054 = vunpack.c.l.s4 1983009808
        %v1055 = vunpack.c.0.s8 %v1054
        %v1056 = vlaneseq
        %v1057 = vshrl.u32 %v1056, 7
        %v1058 = vsub.s32 %v1055, %v1057
        %v1059 = vrot.slane %v1052, %v1058
        %v1060 = vcombine.high %v1059, %v1059
        %v1061 = vcombine.high %v407, %v407
        %v1063 = vunpack.c.l.s4 1983009808
        %v1064 = vunpack.c.0.s8 %v1063
        %v1065 = vlaneseq
        %v1066 = vshrl.u32 %v1065, 7
        %v1067 = vsub.s32 %v1064, %v1066
        %v1068 = vrot.slane %v1061, %v1067
        %v1069 = vcombine.high %v1068, %v1068
        %1070 = vrot.lane.b32.xlu0 %v845, 95
        %v1071 = vpop.permute.xlu0 %1070
        %1072 = vrot.lane.b32.xlu0 %v847, 95
        %v1073 = vpop.permute.xlu0 %1072
        %1074 = vrot.lane.b32.xlu0 %v1059, 95
        %v1075 = vpop.permute.xlu0 %1074
        %1076 = vrot.lane.b32.xlu0 %v1060, 95
        %v1077 = vpop.permute.xlu0 %1076
        %1078 = vrot.lane.b32.xlu0 %v862, 95
        %v1079 = vpop.permute.xlu0 %1078
        %1080 = vrot.lane.b32.xlu0 %v864, 95
        %v1081 = vpop.permute.xlu0 %1080
        %1082 = vrot.lane.b32.xlu0 %v1068, 95
        %v1083 = vpop.permute.xlu0 %1082
        %1084 = vrot.lane.b32.xlu0 %v1069, 95
        %v1085 = vpop.permute.xlu0 %1084
        %1086 = vrot.lane.b32.xlu0 %v879, 95
        %v1087 = vpop.permute.xlu0 %1086
        %vm1088 = vcmask 777216
        %v1089 = vsel %vm1088, %v1071, %v1073
        %v1090 = vsel %vm1088, %v1073, %v1075
        %v1091 = vsel %vm1088, %v1075, %v1077
        %v1092 = vsel %vm1088, %v1077, %v1079
        %v1093 = vsel %vm1088, %v1079, %v1081
        %v1094 = vsel %vm1088, %v1081, %v1083
        %v1095 = vsel %vm1088, %v1083, %v1085
        %v1096 = vsel %vm1088, %v1085, %v1087
        %v1100 = vcombine.low %v757, %v757
        %v1102 = vunpack.c.l.s4 1983009808
        %v1103 = vunpack.c.0.s8 %v1102
        %v1104 = vlaneseq
        %v1105 = vshrl.u32 %v1104, 7
        %v1106 = vsub.s32 %v1103, %v1105
        %v1107 = vrot.slane %v1100, %v1106
        %v1109 = vunpack.c.l.s4 1983009808
        %v1110 = vunpack.c.0.s8 %v1109
        %v1111 = vlaneseq
        %v1112 = vshrl.u32 %v1111, 7
        %v1113 = vsub.s32 %v1110, %v1112
        %v1114 = vrot.slane %v757, %v1113
        %v1115 = vcombine.high %v1107, %v1107
        %v1116 = vcombine.high %v1114, %v1114
        %v1117 = vcombine.low %v758, %v758
        %v1119 = vunpack.c.l.s4 1983009808
        %v1120 = vunpack.c.0.s8 %v1119
        %v1121 = vlaneseq
        %v1122 = vshrl.u32 %v1121, 7
        %v1123 = vsub.s32 %v1120, %v1122
        %v1124 = vrot.slane %v1117, %v1123
        %v1126 = vunpack.c.l.s4 1983009808
        %v1127 = vunpack.c.0.s8 %v1126
        %v1128 = vlaneseq
        %v1129 = vshrl.u32 %v1128, 7
        %v1130 = vsub.s32 %v1127, %v1129
        %v1131 = vrot.slane %v758, %v1130
        %v1132 = vcombine.high %v1124, %v1124
        %v1133 = vcombine.high %v1131, %v1131
        %v1134 = vcombine.low %v759, %v759
        %v1136 = vunpack.c.l.s4 1983009808
        %v1137 = vunpack.c.0.s8 %v1136
        %v1138 = vlaneseq
        %v1139 = vshrl.u32 %v1138, 7
        %v1140 = vsub.s32 %v1137, %v1139
        %v1141 = vrot.slane %v1134, %v1140
        %1142 = vrot.lane.b32.xlu0 %v1107, 94
        %v1143 = vpop.permute.xlu0 %1142
        %1144 = vrot.lane.b32.xlu0 %v1115, 94
        %v1145 = vpop.permute.xlu0 %1144
        %1146 = vrot.lane.b32.xlu0 %v1114, 94
        %v1147 = vpop.permute.xlu0 %1146
        %1148 = vrot.lane.b32.xlu0 %v1116, 94
        %v1149 = vpop.permute.xlu0 %1148
        %1150 = vrot.lane.b32.xlu0 %v1124, 94
        %v1151 = vpop.permute.xlu0 %1150
        %1152 = vrot.lane.b32.xlu0 %v1132, 94
        %v1153 = vpop.permute.xlu0 %1152
        %1154 = vrot.lane.b32.xlu0 %v1131, 94
        %v1155 = vpop.permute.xlu0 %1154
        %1156 = vrot.lane.b32.xlu0 %v1133, 94
        %v1157 = vpop.permute.xlu0 %1156
        %1158 = vrot.lane.b32.xlu0 %v1141, 94
        %v1159 = vpop.permute.xlu0 %1158
        %vm1160 = vcmask 769024
        %v1161 = vsel %vm1160, %v1143, %v1145
        %v1162 = vsel %vm1160, %v1145, %v1147
        %v1163 = vsel %vm1160, %v1147, %v1149
        %v1164 = vsel %vm1160, %v1149, %v1151
        %v1165 = vsel %vm1160, %v1151, %v1153
        %v1166 = vsel %vm1160, %v1153, %v1155
        %v1167 = vsel %vm1160, %v1155, %v1157
        %v1168 = vsel %vm1160, %v1157, %v1159
        %v1172 = vcombine.high %v773, %v773
        %v1174 = vunpack.c.l.s4 1983009808
        %v1175 = vunpack.c.0.s8 %v1174
        %v1176 = vlaneseq
        %v1177 = vshrl.u32 %v1176, 7
        %v1178 = vsub.s32 %v1175, %v1177
        %v1179 = vrot.slane %v773, %v1178
        %v1181 = vunpack.c.l.s4 1983009808
        %v1182 = vunpack.c.0.s8 %v1181
        %v1183 = vlaneseq
        %v1184 = vshrl.u32 %v1183, 7
        %v1185 = vsub.s32 %v1182, %v1184
        %v1186 = vrot.slane %v1172, %v1185
        %v1187 = vcombine.low %v1179, %v1179
        %v1188 = vcombine.low %v1186, %v1186
        %v1189 = vcombine.high %v774, %v774
        %v1191 = vunpack.c.l.s4 1983009808
        %v1192 = vunpack.c.0.s8 %v1191
        %v1193 = vlaneseq
        %v1194 = vshrl.u32 %v1193, 7
        %v1195 = vsub.s32 %v1192, %v1194
        %v1196 = vrot.slane %v774, %v1195
        %v1198 = vunpack.c.l.s4 1983009808
        %v1199 = vunpack.c.0.s8 %v1198
        %v1200 = vlaneseq
        %v1201 = vshrl.u32 %v1200, 7
        %v1202 = vsub.s32 %v1199, %v1201
        %v1203 = vrot.slane %v1189, %v1202
        %v1204 = vcombine.low %v1196, %v1196
        %v1205 = vcombine.low %v1203, %v1203
        %v1207 = vunpack.c.l.s4 1983009808
        %v1208 = vunpack.c.0.s8 %v1207
        %v1209 = vlaneseq
        %v1210 = vshrl.u32 %v1209, 7
        %v1211 = vsub.s32 %v1208, %v1210
        %v1212 = vrot.slane %v775, %v1211
        %v1213 = vcombine.low %v1212, %v1212
        %1214 = vrot.lane.b32.xlu0 %v1187, 64
        %v1215 = vpop.permute.xlu0 %1214
        %1216 = vrot.lane.b32.xlu0 %v1179, 64
        %v1217 = vpop.permute.xlu0 %1216
        %1218 = vrot.lane.b32.xlu0 %v1188, 64
        %v1219 = vpop.permute.xlu0 %1218
        %1220 = vrot.lane.b32.xlu0 %v1186, 64
        %v1221 = vpop.permute.xlu0 %1220
        %1222 = vrot.lane.b32.xlu0 %v1204, 64
        %v1223 = vpop.permute.xlu0 %1222
        %1224 = vrot.lane.b32.xlu0 %v1196, 64
        %v1225 = vpop.permute.xlu0 %1224
        %1226 = vrot.lane.b32.xlu0 %v1205, 64
        %v1227 = vpop.permute.xlu0 %1226
        %1228 = vrot.lane.b32.xlu0 %v1203, 64
        %v1229 = vpop.permute.xlu0 %1228
        %1230 = vrot.lane.b32.xlu0 %v1213, 64
        %v1231 = vpop.permute.xlu0 %1230
        %v1232 = vsel %vm766, %v1215, %v1217
        %v1233 = vsel %vm766, %v1217, %v1219
        %v1234 = vsel %vm766, %v1219, %v1221
        %v1235 = vsel %vm766, %v1221, %v1223
        %v1236 = vsel %vm766, %v1223, %v1225
        %v1237 = vsel %vm766, %v1225, %v1227
        %v1238 = vsel %vm766, %v1227, %v1229
        %v1239 = vsel %vm766, %v1229, %v1231
        %v1240 = vcombine.low %v838, %v838
        %v1241 = vcombine.low %v845, %v845
        %v1242 = vcombine.low %v855, %v855
        %v1243 = vcombine.low %v862, %v862
        %v1244 = vcombine.low %v872, %v872
        %1245 = vrot.lane.b32.xlu0 %v1240, 63
        %v1246 = vpop.permute.xlu0 %1245
        %1247 = vrot.lane.b32.xlu0 %v838, 63
        %v1248 = vpop.permute.xlu0 %1247
        %1249 = vrot.lane.b32.xlu0 %v1241, 63
        %v1250 = vpop.permute.xlu0 %1249
        %1251 = vrot.lane.b32.xlu0 %v845, 63
        %v1252 = vpop.permute.xlu0 %1251
        %1253 = vrot.lane.b32.xlu0 %v1242, 63
        %v1254 = vpop.permute.xlu0 %1253
        %1255 = vrot.lane.b32.xlu0 %v855, 63
        %v1256 = vpop.permute.xlu0 %1255
        %1257 = vrot.lane.b32.xlu0 %v1243, 63
        %v1258 = vpop.permute.xlu0 %1257
        %1259 = vrot.lane.b32.xlu0 %v862, 63
        %v1260 = vpop.permute.xlu0 %1259
        %1261 = vrot.lane.b32.xlu0 %v1244, 63
        %v1262 = vpop.permute.xlu0 %1261
        %vm1263 = vcmask 515072
        %v1264 = vsel %vm1263, %v1246, %v1248
        %v1265 = vsel %vm1263, %v1248, %v1250
        %v1266 = vsel %vm1263, %v1250, %v1252
        %v1267 = vsel %vm1263, %v1252, %v1254
        %v1268 = vsel %vm1263, %v1254, %v1256
        %v1269 = vsel %vm1263, %v1256, %v1258
        %v1270 = vsel %vm1263, %v1258, %v1260
        %v1271 = vsel %vm1263, %v1260, %v1262
        %v1275 = vcombine.high %v789, %v789
        %v1277 = vunpack.c.l.s4 1983009808
        %v1278 = vunpack.c.0.s8 %v1277
        %v1279 = vlaneseq
        %v1280 = vshrl.u32 %v1279, 7
        %v1281 = vsub.s32 %v1278, %v1280
        %v1282 = vrot.slane %v789, %v1281
        %v1284 = vunpack.c.l.s4 1983009808
        %v1285 = vunpack.c.0.s8 %v1284
        %v1286 = vlaneseq
        %v1287 = vshrl.u32 %v1286, 7
        %v1288 = vsub.s32 %v1285, %v1287
        %v1289 = vrot.slane %v1275, %v1288
        %v1290 = vcombine.high %v1282, %v1282
        %v1291 = vcombine.high %v1289, %v1289
        %v1292 = vcombine.high %v790, %v790
        %v1294 = vunpack.c.l.s4 1983009808
        %v1295 = vunpack.c.0.s8 %v1294
        %v1296 = vlaneseq
        %v1297 = vshrl.u32 %v1296, 7
        %v1298 = vsub.s32 %v1295, %v1297
        %v1299 = vrot.slane %v790, %v1298
        %v1301 = vunpack.c.l.s4 1983009808
        %v1302 = vunpack.c.0.s8 %v1301
        %v1303 = vlaneseq
        %v1304 = vshrl.u32 %v1303, 7
        %v1305 = vsub.s32 %v1302, %v1304
        %v1306 = vrot.slane %v1292, %v1305
        %v1307 = vcombine.high %v1299, %v1299
        %v1308 = vcombine.high %v1306, %v1306
        %v1310 = vunpack.c.l.s4 1983009808
        %v1311 = vunpack.c.0.s8 %v1310
        %v1312 = vlaneseq
        %v1313 = vshrl.u32 %v1312, 7
        %v1314 = vsub.s32 %v1311, %v1313
        %v1315 = vrot.slane %v791, %v1314
        %1316 = vrot.lane.b32.xlu0 %v1282, 62
        %v1317 = vpop.permute.xlu0 %1316
        %1318 = vrot.lane.b32.xlu0 %v1290, 62
        %v1319 = vpop.permute.xlu0 %1318
        %1320 = vrot.lane.b32.xlu0 %v1289, 62
        %v1321 = vpop.permute.xlu0 %1320
        %1322 = vrot.lane.b32.xlu0 %v1291, 62
        %v1323 = vpop.permute.xlu0 %1322
        %1324 = vrot.lane.b32.xlu0 %v1299, 62
        %v1325 = vpop.permute.xlu0 %1324
        %1326 = vrot.lane.b32.xlu0 %v1307, 62
        %v1327 = vpop.permute.xlu0 %1326
        %1328 = vrot.lane.b32.xlu0 %v1306, 62
        %v1329 = vpop.permute.xlu0 %1328
        %1330 = vrot.lane.b32.xlu0 %v1308, 62
        %v1331 = vpop.permute.xlu0 %1330
        %1332 = vrot.lane.b32.xlu0 %v1315, 62
        %v1333 = vpop.permute.xlu0 %1332
        %vm1334 = vcmask 506880
        %v1335 = vsel %vm1334, %v1317, %v1319
        %v1336 = vsel %vm1334, %v1319, %v1321
        %v1337 = vsel %vm1334, %v1321, %v1323
        %v1338 = vsel %vm1334, %v1323, %v1325
        %v1339 = vsel %vm1334, %v1325, %v1327
        %v1340 = vsel %vm1334, %v1327, %v1329
        %v1341 = vsel %vm1334, %v1329, %v1331
        %v1342 = vsel %vm1334, %v1331, %v1333
        %vm1343 = vcmask 1041408
        %v1346 = vsel %vm1343, %v801, %v899
        %v1349 = vsel %vm1343, %v809, %v900
        %v1352 = vsel %vm1343, %v808, %v901
        %v1355 = vsel %vm1343, %v810, %v902
        %v1358 = vsel %vm1343, %v818, %v903
        %v1361 = vsel %vm1343, %v826, %v904
        %v1364 = vsel %vm1343, %v825, %v905
        %v1367 = vsel %vm1343, %v827, %v906
        %vm1368 = vcmask 1043456
        %v1370 = vsel %vm1368, %v1346, %v971
        %v1372 = vsel %vm1368, %v1349, %v972
        %v1374 = vsel %vm1368, %v1352, %v973
        %v1376 = vsel %vm1368, %v1355, %v974
        %v1378 = vsel %vm1368, %v1358, %v975
        %v1380 = vsel %vm1368, %v1361, %v976
        %v1382 = vsel %vm1368, %v1364, %v977
        %v1384 = vsel %vm1368, %v1367, %v978
        %vm1385 = vcmask 1045504
        %v1387 = vsel %vm1385, %v1370, %v1044
        %v1390 = vsel %vm1385, %v1372, %v1045
        %v1393 = vsel %vm1385, %v1374, %v1046
        %v1396 = vsel %vm1385, %v1376, %v1047
        %v1399 = vsel %vm1385, %v1378, %v1048
        %v1402 = vsel %vm1385, %v1380, %v1049
        %v1405 = vsel %vm1385, %v1382, %v1050
        %v1408 = vsel %vm1385, %v1384, %v1051
        %v1412 = vsel %vm1343, %v1089, %v1161
        %v1415 = vsel %vm1343, %v1090, %v1162
        %v1418 = vsel %vm1343, %v1091, %v1163
        %v1421 = vsel %vm1343, %v1092, %v1164
        %v1424 = vsel %vm1343, %v1093, %v1165
        %v1427 = vsel %vm1343, %v1094, %v1166
        %v1430 = vsel %vm1343, %v1095, %v1167
        %v1433 = vsel %vm1343, %v1096, %v1168
        %v1435 = vsel %vm1368, %v1412, %v1232
        %v1437 = vsel %vm1368, %v1415, %v1233
        %v1439 = vsel %vm1368, %v1418, %v1234
        %v1441 = vsel %vm1368, %v1421, %v1235
        %v1443 = vsel %vm1368, %v1424, %v1236
        %v1445 = vsel %vm1368, %v1427, %v1237
        %v1447 = vsel %vm1368, %v1430, %v1238
        %v1449 = vsel %vm1368, %v1433, %v1239
        %v1451 = vsel %vm1385, %v1435, %v1264
        %v1454 = vsel %vm1385, %v1437, %v1265
        %v1457 = vsel %vm1385, %v1439, %v1266
        %v1460 = vsel %vm1385, %v1441, %v1267
        %v1463 = vsel %vm1385, %v1443, %v1268
        %v1466 = vsel %vm1385, %v1445, %v1269
        %v1469 = vsel %vm1385, %v1447, %v1270
        %v1472 = vsel %vm1385, %v1449, %v1271
        %v1474 = vld [vmem:[%s4] sm:$0xf]
        %v1475 = vld [vmem:[%s4 + $0x4] sm:$0xf]
        %v1476 = vld [vmem:[%s4 + $0x8] sm:$0xf]
        %v1477 = vld [vmem:[%s4 + $0xc] sm:$0xf]
        %v1478 = vld [vmem:[%s4 + $0x10] sm:$0xf]
        %v1479 = vld [vmem:[%s4 + $0x14] sm:$0xf]
        %v1480 = vld [vmem:[%s4 + $0x18] sm:$0xf]
        %v1481 = vld [vmem:[%s4 + $0x1c] sm:$0xf]
        %v1482 = vld [vmem:[%s5] sm:$0xff]
        %v1483 = vld [vmem:[%s5 + $0x8] sm:$0xff]
        %v1484 = vld [vmem:[%s5 + $0x10] sm:$0xff]
        %v1485 = vld [vmem:[%s5 + $0x18] sm:$0xff]
        %v1486 = vld [vmem:[%s5 + $0x20] sm:$0xff]
        %v1487 = vld [vmem:[%s5 + $0x28] sm:$0xff]
        %v1488 = vld [vmem:[%s5 + $0x30] sm:$0xff]
        %v1489 = vld [vmem:[%s5 + $0x38] sm:$0xff]
        %1491 = vset.pattern.permute.xlu0 0
        %1492 = vperm.xlu0 %1491, %v1482
        %v1493 = vpop.permute.xlu0 %1492
        %1496 = vset.pattern.permute.xlu0 0
        %1497 = vperm.xlu0 %1496, %v1483
        %v1498 = vpop.permute.xlu0 %1497
        %1501 = vset.pattern.permute.xlu0 0
        %1502 = vperm.xlu0 %1501, %v1484
        %v1503 = vpop.permute.xlu0 %1502
        %1506 = vset.pattern.permute.xlu0 0
        %1507 = vperm.xlu0 %1506, %v1485
        %v1508 = vpop.permute.xlu0 %1507
        %1511 = vset.pattern.permute.xlu0 0
        %1512 = vperm.xlu0 %1511, %v1486
        %v1513 = vpop.permute.xlu0 %1512
        %1516 = vset.pattern.permute.xlu0 0
        %1517 = vperm.xlu0 %1516, %v1487
        %v1518 = vpop.permute.xlu0 %1517
        %1521 = vset.pattern.permute.xlu0 0
        %1522 = vperm.xlu0 %1521, %v1488
        %v1523 = vpop.permute.xlu0 %1522
        %1526 = vset.pattern.permute.xlu0 0
        %1527 = vperm.xlu0 %1526, %v1489
        %v1528 = vpop.permute.xlu0 %1527
        %v1538 = vunpack.c.l.b16 %v1474
        %v1539 = vunpack.c.l.b16 %v1475
        %v1540 = vunpack.c.l.b16 %v1476
        %v1541 = vunpack.c.l.b16 %v1477
        %v1542 = vunpack.c.l.b16 %v1478
        %v1543 = vunpack.c.l.b16 %v1479
        %v1544 = vunpack.c.l.b16 %v1480
        %v1545 = vunpack.c.l.b16 %v1481
        %v1546 = vpack.c.b16 %v1539, %v1538
        %v1547 = vpack.c.b16 %v1541, %v1540
        %v1548 = vpack.c.b16 %v1543, %v1542
        %v1549 = vpack.c.b16 %v1545, %v1544
        %vm1550 = vcmask 293888
        %v1552 = vsel %vm1550, %v1546, 0
        %v1555 = vsel %vm1550, %v1547, 0
        %v1558 = vsel %vm1550, %v1548, 0
        %v1561 = vsel %vm1550, %v1549, 0
        %v1564 = vsel %vm1343, %v1335, 0
        %v1567 = vsel %vm1343, %v1336, 0
        %v1570 = vsel %vm1343, %v1337, 0
        %v1573 = vsel %vm1343, %v1338, 0
        %v1576 = vsel %vm1343, %v1339, 0
        %v1579 = vsel %vm1343, %v1340, 0
        %v1582 = vsel %vm1343, %v1341, 0
        %v1585 = vsel %vm1343, %v1342, 0
        %1587 = vmatprep.subr.bf16.mxu0 0
        %1588 = vmatpush1.bf16.msra.mxu0 0
        %1589 = vmatprep.subr.bf16.mxu0 0
        %1590 = vmatpush1.bf16.msra.mxu0 0
        %1591 = vmatprep.subr.bf16.mxu0 0
        %1592 = vmatpush1.bf16.msra.mxu0 0
        %1593 = vmatprep.subr.bf16.mxu0 0
        %1594 = vmatpush1.bf16.msra.mxu0 0
        %1595 = vmatprep.subr.bf16.mxu0 0
        %1596 = vmatpush1.bf16.msra.mxu0 0
        %1597 = vmatprep.subr.bf16.mxu0 %v1567
        %1598 = vmatpush1.bf16.msra.mxu0 %v1564
        %1599 = vmatprep.subr.bf16.mxu0 %v1454
        %1600 = vmatpush1.bf16.msra.mxu0 %v1451
        %1601 = vmatprep.subr.bf16.mxu0 %v1390
        %1602 = vmatpush1.bf16.msra.mxu0 %v1387
        %1603 = vmatprep.subr.bf16.mxu0 0
        %1604 = vmatpush2.bf16.msra.mxu0 0
        %1605 = vmatprep.subr.bf16.mxu0 0
        %1606 = vmatpush2.bf16.msra.mxu0 0
        %1607 = vmatprep.subr.bf16.mxu0 0
        %1608 = vmatpush2.bf16.msra.mxu0 0
        %1609 = vmatprep.subr.bf16.mxu0 0
        %1610 = vmatpush2.bf16.msra.mxu0 0
        %1611 = vmatprep.subr.bf16.mxu0 0
        %1612 = vmatpush2.bf16.msra.mxu0 0
        %1613 = vmatprep.subr.bf16.mxu0 0
        %1614 = vmatpush2.bf16.msra.mxu0 0
        %1615 = vmatprep.subr.bf16.mxu0 0
        %1616 = vmatpush2.bf16.msra.mxu0 0
        %1617 = vmatprep.subr.bf16.mxu0 0
        %1618 = vmatpush2.bf16.msra.mxu0 0
        %1619 = vmatprep.mubr.bf16.mxu0 0
        %1620 = vmatmul.mubr.bf16.gmra.mxu0 %v1552
        %v1621 = vpop.f32.mrf.mxu0
        %v1622 = vadd.f32 %v1493, %v1621
        %v1623 = vpop.f32.mrf.mxu0
        %v1624 = vadd.f32 %v1493, %v1623
        %v1625 = vpop.f32.mrf.mxu0
        %v1626 = vadd.f32 %v1498, %v1625
        %v1627 = vpop.f32.mrf.mxu0
        %v1628 = vadd.f32 %v1498, %v1627
        %1629 = vmatprep.mubr.bf16.mxu0 0
        %1630 = vmatmul.mubr.bf16.gmra.mxu0 %v1555
        %v1631 = vpop.f32.mrf.mxu0
        %v1632 = vadd.f32 %v1503, %v1631
        %v1633 = vpop.f32.mrf.mxu0
        %v1634 = vadd.f32 %v1503, %v1633
        %v1635 = vpop.f32.mrf.mxu0
        %v1636 = vadd.f32 %v1508, %v1635
        %v1637 = vpop.f32.mrf.mxu0
        %v1638 = vadd.f32 %v1508, %v1637
        %1639 = vmatprep.mubr.bf16.mxu0 0
        %1640 = vmatmul.mubr.bf16.gmra.mxu0 %v1558
        %v1641 = vpop.f32.mrf.mxu0
        %v1642 = vadd.f32 %v1513, %v1641
        %v1643 = vpop.f32.mrf.mxu0
        %v1644 = vadd.f32 %v1513, %v1643
        %v1645 = vpop.f32.mrf.mxu0
        %v1646 = vadd.f32 %v1518, %v1645
        %v1647 = vpop.f32.mrf.mxu0
        %v1648 = vadd.f32 %v1518, %v1647
        %1649 = vmatprep.mubr.bf16.mxu0 0
        %1650 = vmatmul.mubr.bf16.gmra.mxu0 %v1561
        %v1651 = vpop.f32.mrf.mxu0
        %v1652 = vadd.f32 %v1523, %v1651
        %v1653 = vpop.f32.mrf.mxu0
        %v1654 = vadd.f32 %v1523, %v1653
        %v1655 = vpop.f32.mrf.mxu0
        %v1656 = vadd.f32 %v1528, %v1655
        %v1657 = vpop.f32.mrf.mxu0
        %v1658 = vadd.f32 %v1528, %v1657
        %1659 = vdwg.mxu0
        %1660 = vmatprep.subr.bf16.mxu0 0
        %1661 = vmatpush1.bf16.msra.mxu0 0
        %1662 = vmatprep.subr.bf16.mxu0 0
        %1663 = vmatpush1.bf16.msra.mxu0 0
        %1664 = vmatprep.subr.bf16.mxu0 0
        %1665 = vmatpush1.bf16.msra.mxu0 0
        %1666 = vmatprep.subr.bf16.mxu0 0
        %1667 = vmatpush1.bf16.msra.mxu0 0
        %1668 = vmatprep.subr.bf16.mxu0 0
        %1669 = vmatpush1.bf16.msra.mxu0 0
        %1670 = vmatprep.subr.bf16.mxu0 %v1573
        %1671 = vmatpush1.bf16.msra.mxu0 %v1570
        %1672 = vmatprep.subr.bf16.mxu0 %v1460
        %1673 = vmatpush1.bf16.msra.mxu0 %v1457
        %1674 = vmatprep.subr.bf16.mxu0 %v1396
        %1675 = vmatpush1.bf16.msra.mxu0 %v1393
        %1676 = vmatprep.subr.bf16.mxu0 0
        %1677 = vmatpush2.bf16.msra.mxu0 0
        %1678 = vmatprep.subr.bf16.mxu0 0
        %1679 = vmatpush2.bf16.msra.mxu0 0
        %1680 = vmatprep.subr.bf16.mxu0 0
        %1681 = vmatpush2.bf16.msra.mxu0 0
        %1682 = vmatprep.subr.bf16.mxu0 0
        %1683 = vmatpush2.bf16.msra.mxu0 0
        %1684 = vmatprep.subr.bf16.mxu0 0
        %1685 = vmatpush2.bf16.msra.mxu0 0
        %1686 = vmatprep.subr.bf16.mxu0 0
        %1687 = vmatpush2.bf16.msra.mxu0 0
        %1688 = vmatprep.subr.bf16.mxu0 0
        %1689 = vmatpush2.bf16.msra.mxu0 0
        %1690 = vmatprep.subr.bf16.mxu0 0
        %1691 = vmatpush2.bf16.msra.mxu0 0
        %1692 = vmatprep.mubr.bf16.mxu0 0
        %1693 = vmatmul.mubr.bf16.gmra.mxu0 %v1552
        %v1694 = vpop.f32.mrf.mxu0
        %v1695 = vadd.f32 %v1493, %v1694
        %v1696 = vpop.f32.mrf.mxu0
        %v1697 = vadd.f32 %v1493, %v1696
        %v1698 = vpop.f32.mrf.mxu0
        %v1699 = vadd.f32 %v1498, %v1698
        %v1700 = vpop.f32.mrf.mxu0
        %v1701 = vadd.f32 %v1498, %v1700
        %1702 = vmatprep.mubr.bf16.mxu0 0
        %1703 = vmatmul.mubr.bf16.gmra.mxu0 %v1555
        %v1704 = vpop.f32.mrf.mxu0
        %v1705 = vadd.f32 %v1503, %v1704
        %v1706 = vpop.f32.mrf.mxu0
        %v1707 = vadd.f32 %v1503, %v1706
        %v1708 = vpop.f32.mrf.mxu0
        %v1709 = vadd.f32 %v1508, %v1708
        %v1710 = vpop.f32.mrf.mxu0
        %v1711 = vadd.f32 %v1508, %v1710
        %1712 = vmatprep.mubr.bf16.mxu0 0
        %1713 = vmatmul.mubr.bf16.gmra.mxu0 %v1558
        %v1714 = vpop.f32.mrf.mxu0
        %v1715 = vadd.f32 %v1513, %v1714
        %v1716 = vpop.f32.mrf.mxu0
        %v1717 = vadd.f32 %v1513, %v1716
        %v1718 = vpop.f32.mrf.mxu0
        %v1719 = vadd.f32 %v1518, %v1718
        %v1720 = vpop.f32.mrf.mxu0
        %v1721 = vadd.f32 %v1518, %v1720
        %1722 = vmatprep.mubr.bf16.mxu0 0
        %1723 = vmatmul.mubr.bf16.gmra.mxu0 %v1561
        %v1724 = vpop.f32.mrf.mxu0
        %v1725 = vadd.f32 %v1523, %v1724
        %v1726 = vpop.f32.mrf.mxu0
        %v1727 = vadd.f32 %v1523, %v1726
        %v1728 = vpop.f32.mrf.mxu0
        %v1729 = vadd.f32 %v1528, %v1728
        %v1730 = vpop.f32.mrf.mxu0
        %v1731 = vadd.f32 %v1528, %v1730
        %1732 = vdwg.mxu0
        %1733 = vmatprep.subr.bf16.mxu0 0
        %1734 = vmatpush1.bf16.msra.mxu0 0
        %1735 = vmatprep.subr.bf16.mxu0 0
        %1736 = vmatpush1.bf16.msra.mxu0 0
        %1737 = vmatprep.subr.bf16.mxu0 0
        %1738 = vmatpush1.bf16.msra.mxu0 0
        %1739 = vmatprep.subr.bf16.mxu0 0
        %1740 = vmatpush1.bf16.msra.mxu0 0
        %1741 = vmatprep.subr.bf16.mxu0 0
        %1742 = vmatpush1.bf16.msra.mxu0 0
        %1743 = vmatprep.subr.bf16.mxu0 %v1579
        %1744 = vmatpush1.bf16.msra.mxu0 %v1576
        %1745 = vmatprep.subr.bf16.mxu0 %v1466
        %1746 = vmatpush1.bf16.msra.mxu0 %v1463
        %1747 = vmatprep.subr.bf16.mxu0 %v1402
        %1748 = vmatpush1.bf16.msra.mxu0 %v1399
        %1749 = vmatprep.subr.bf16.mxu0 0
        %1750 = vmatpush2.bf16.msra.mxu0 0
        %1751 = vmatprep.subr.bf16.mxu0 0
        %1752 = vmatpush2.bf16.msra.mxu0 0
        %1753 = vmatprep.subr.bf16.mxu0 0
        %1754 = vmatpush2.bf16.msra.mxu0 0
        %1755 = vmatprep.subr.bf16.mxu0 0
        %1756 = vmatpush2.bf16.msra.mxu0 0
        %1757 = vmatprep.subr.bf16.mxu0 0
        %1758 = vmatpush2.bf16.msra.mxu0 0
        %1759 = vmatprep.subr.bf16.mxu0 0
        %1760 = vmatpush2.bf16.msra.mxu0 0
        %1761 = vmatprep.subr.bf16.mxu0 0
        %1762 = vmatpush2.bf16.msra.mxu0 0
        %1763 = vmatprep.subr.bf16.mxu0 0
        %1764 = vmatpush2.bf16.msra.mxu0 0
        %1765 = vmatprep.mubr.bf16.mxu0 0
        %1766 = vmatmul.mubr.bf16.gmra.mxu0 %v1552
        %v1767 = vpop.f32.mrf.mxu0
        %v1768 = vadd.f32 %v1493, %v1767
        %v1769 = vpop.f32.mrf.mxu0
        %v1770 = vadd.f32 %v1493, %v1769
        %v1771 = vpop.f32.mrf.mxu0
        %v1772 = vadd.f32 %v1498, %v1771
        %v1773 = vpop.f32.mrf.mxu0
        %v1774 = vadd.f32 %v1498, %v1773
        %1775 = vmatprep.mubr.bf16.mxu0 0
        %1776 = vmatmul.mubr.bf16.gmra.mxu0 %v1555
        %v1777 = vpop.f32.mrf.mxu0
        %v1778 = vadd.f32 %v1503, %v1777
        %v1779 = vpop.f32.mrf.mxu0
        %v1780 = vadd.f32 %v1503, %v1779
        %v1781 = vpop.f32.mrf.mxu0
        %v1782 = vadd.f32 %v1508, %v1781
        %v1783 = vpop.f32.mrf.mxu0
        %v1784 = vadd.f32 %v1508, %v1783
        %1785 = vmatprep.mubr.bf16.mxu0 0
        %1786 = vmatmul.mubr.bf16.gmra.mxu0 %v1558
        %v1787 = vpop.f32.mrf.mxu0
        %v1788 = vadd.f32 %v1513, %v1787
        %v1789 = vpop.f32.mrf.mxu0
        %v1790 = vadd.f32 %v1513, %v1789
        %v1791 = vpop.f32.mrf.mxu0
        %v1792 = vadd.f32 %v1518, %v1791
        %v1793 = vpop.f32.mrf.mxu0
        %v1794 = vadd.f32 %v1518, %v1793
        %1795 = vmatprep.mubr.bf16.mxu0 0
        %1796 = vmatmul.mubr.bf16.gmra.mxu0 %v1561
        %v1797 = vpop.f32.mrf.mxu0
        %v1798 = vadd.f32 %v1523, %v1797
        %v1799 = vpop.f32.mrf.mxu0
        %v1800 = vadd.f32 %v1523, %v1799
        %v1801 = vpop.f32.mrf.mxu0
        %v1802 = vadd.f32 %v1528, %v1801
        %v1803 = vpop.f32.mrf.mxu0
        %v1804 = vadd.f32 %v1528, %v1803
        %1805 = vdwg.mxu0
        %1806 = vmatprep.subr.bf16.mxu0 0
        %1807 = vmatpush1.bf16.msra.mxu0 0
        %1808 = vmatprep.subr.bf16.mxu0 0
        %1809 = vmatpush1.bf16.msra.mxu0 0
        %1810 = vmatprep.subr.bf16.mxu0 0
        %1811 = vmatpush1.bf16.msra.mxu0 0
        %1812 = vmatprep.subr.bf16.mxu0 0
        %1813 = vmatpush1.bf16.msra.mxu0 0
        %1814 = vmatprep.subr.bf16.mxu0 0
        %1815 = vmatpush1.bf16.msra.mxu0 0
        %1816 = vmatprep.subr.bf16.mxu0 %v1585
        %1817 = vmatpush1.bf16.msra.mxu0 %v1582
        %1818 = vmatprep.subr.bf16.mxu0 %v1472
        %1819 = vmatpush1.bf16.msra.mxu0 %v1469
        %1820 = vmatprep.subr.bf16.mxu0 %v1408
        %1821 = vmatpush1.bf16.msra.mxu0 %v1405
        %1822 = vmatprep.subr.bf16.mxu0 0
        %1823 = vmatpush2.bf16.msra.mxu0 0
        %1824 = vmatprep.subr.bf16.mxu0 0
        %1825 = vmatpush2.bf16.msra.mxu0 0
        %1826 = vmatprep.subr.bf16.mxu0 0
        %1827 = vmatpush2.bf16.msra.mxu0 0
        %1828 = vmatprep.subr.bf16.mxu0 0
        %1829 = vmatpush2.bf16.msra.mxu0 0
        %1830 = vmatprep.subr.bf16.mxu0 0
        %1831 = vmatpush2.bf16.msra.mxu0 0
        %1832 = vmatprep.subr.bf16.mxu0 0
        %1833 = vmatpush2.bf16.msra.mxu0 0
        %1834 = vmatprep.subr.bf16.mxu0 0
        %1835 = vmatpush2.bf16.msra.mxu0 0
        %1836 = vmatprep.subr.bf16.mxu0 0
        %1837 = vmatpush2.bf16.msra.mxu0 0
        %1838 = vmatprep.mubr.bf16.mxu0 0
        %1839 = vmatmul.mubr.bf16.gmra.mxu0 %v1552
        %v1840 = vpop.f32.mrf.mxu0
        %v1841 = vadd.f32 %v1493, %v1840
        %v1842 = vpop.f32.mrf.mxu0
        %v1843 = vadd.f32 %v1493, %v1842
        %v1844 = vpop.f32.mrf.mxu0
        %v1845 = vadd.f32 %v1498, %v1844
        %v1846 = vpop.f32.mrf.mxu0
        %v1847 = vadd.f32 %v1498, %v1846
        %1848 = vmatprep.mubr.bf16.mxu0 0
        %1849 = vmatmul.mubr.bf16.gmra.mxu0 %v1555
        %v1850 = vpop.f32.mrf.mxu0
        %v1851 = vadd.f32 %v1503, %v1850
        %v1852 = vpop.f32.mrf.mxu0
        %v1853 = vadd.f32 %v1503, %v1852
        %v1854 = vpop.f32.mrf.mxu0
        %v1855 = vadd.f32 %v1508, %v1854
        %v1856 = vpop.f32.mrf.mxu0
        %v1857 = vadd.f32 %v1508, %v1856
        %1858 = vmatprep.mubr.bf16.mxu0 0
        %1859 = vmatmul.mubr.bf16.gmra.mxu0 %v1558
        %v1860 = vpop.f32.mrf.mxu0
        %v1861 = vadd.f32 %v1513, %v1860
        %v1862 = vpop.f32.mrf.mxu0
        %v1863 = vadd.f32 %v1513, %v1862
        %v1864 = vpop.f32.mrf.mxu0
        %v1865 = vadd.f32 %v1518, %v1864
        %v1866 = vpop.f32.mrf.mxu0
        %v1867 = vadd.f32 %v1518, %v1866
        %1868 = vmatprep.mubr.bf16.mxu0 0
        %1869 = vmatmul.mubr.bf16.gmra.mxu0 %v1561
        %v1870 = vpop.f32.mrf.mxu0
        %v1871 = vadd.f32 %v1523, %v1870
        %v1872 = vpop.f32.mrf.mxu0
        %v1873 = vadd.f32 %v1523, %v1872
        %v1874 = vpop.f32.mrf.mxu0
        %v1875 = vadd.f32 %v1528, %v1874
        %v1876 = vpop.f32.mrf.mxu0
        %v1877 = vadd.f32 %v1528, %v1876
        %1878 = vdwg.mxu0
        %v1879 = vmax.f32 %v1622, 0.0
        %v1880 = vmax.f32 %v1624, 0.0
        %v1881 = vmax.f32 %v1695, 0.0
        %v1882 = vmax.f32 %v1697, 0.0
        %v1883 = vmax.f32 %v1768, 0.0
        %v1884 = vmax.f32 %v1770, 0.0
        %v1885 = vmax.f32 %v1841, 0.0
        %v1886 = vmax.f32 %v1843, 0.0
        %v1887 = vmax.f32 %v1626, 0.0
        %v1888 = vmax.f32 %v1628, 0.0
        %v1889 = vmax.f32 %v1699, 0.0
        %v1890 = vmax.f32 %v1701, 0.0
        %v1891 = vmax.f32 %v1772, 0.0
        %v1892 = vmax.f32 %v1774, 0.0
        %v1893 = vmax.f32 %v1845, 0.0
        %v1894 = vmax.f32 %v1847, 0.0
        %v1895 = vmax.f32 %v1632, 0.0
        %v1896 = vmax.f32 %v1634, 0.0
        %v1897 = vmax.f32 %v1705, 0.0
        %v1898 = vmax.f32 %v1707, 0.0
        %v1899 = vmax.f32 %v1778, 0.0
        %v1900 = vmax.f32 %v1780, 0.0
        %v1901 = vmax.f32 %v1851, 0.0
        %v1902 = vmax.f32 %v1853, 0.0
        %v1903 = vmax.f32 %v1636, 0.0
        %v1904 = vmax.f32 %v1638, 0.0
        %v1905 = vmax.f32 %v1709, 0.0
        %v1906 = vmax.f32 %v1711, 0.0
        %v1907 = vmax.f32 %v1782, 0.0
        %v1908 = vmax.f32 %v1784, 0.0
        %v1909 = vmax.f32 %v1855, 0.0
        %v1910 = vmax.f32 %v1857, 0.0
        %v1911 = vmax.f32 %v1642, 0.0
        %v1912 = vmax.f32 %v1644, 0.0
        %v1913 = vmax.f32 %v1715, 0.0
        %v1914 = vmax.f32 %v1717, 0.0
        %v1915 = vmax.f32 %v1788, 0.0
        %v1916 = vmax.f32 %v1790, 0.0
        %v1917 = vmax.f32 %v1861, 0.0
        %v1918 = vmax.f32 %v1863, 0.0
        %v1919 = vmax.f32 %v1646, 0.0
        %v1920 = vmax.f32 %v1648, 0.0
        %v1921 = vmax.f32 %v1719, 0.0
        %v1922 = vmax.f32 %v1721, 0.0
        %v1923 = vmax.f32 %v1792, 0.0
        %v1924 = vmax.f32 %v1794, 0.0
        %v1925 = vmax.f32 %v1865, 0.0
        %v1926 = vmax.f32 %v1867, 0.0
        %v1927 = vmax.f32 %v1652, 0.0
        %v1928 = vmax.f32 %v1654, 0.0
        %v1929 = vmax.f32 %v1725, 0.0
        %v1930 = vmax.f32 %v1727, 0.0
        %v1931 = vmax.f32 %v1798, 0.0
        %v1932 = vmax.f32 %v1800, 0.0
        %v1933 = vmax.f32 %v1871, 0.0
        %v1934 = vmax.f32 %v1873, 0.0
        %v1935 = vmax.f32 %v1656, 0.0
        %v1936 = vmax.f32 %v1658, 0.0
        %v1937 = vmax.f32 %v1729, 0.0
        %v1938 = vmax.f32 %v1731, 0.0
        %v1939 = vmax.f32 %v1802, 0.0
        %v1940 = vmax.f32 %v1804, 0.0
        %v1941 = vmax.f32 %v1875, 0.0
        %v1942 = vmax.f32 %v1877, 0.0
        %v1943 = vld [vmem:[%s350] sm:$0xff]
        %v1944 = vld [vmem:[%s350 + $0x8] sm:$0xff]
        %v1945 = vld [vmem:[%s350 + $0x10] sm:$0xff]
        %v1946 = vld [vmem:[%s350 + $0x18] sm:$0xff]
        %v1947 = vld [vmem:[%s350 + $0x20] sm:$0xff]
        %v1948 = vld [vmem:[%s350 + $0x28] sm:$0xff]
        %v1949 = vld [vmem:[%s350 + $0x30] sm:$0xff]
        %v1950 = vld [vmem:[%s350 + $0x38] sm:$0xff]
        %v1951 = vld [vmem:[%s350 + $0x40] sm:$0xff]
        %v1952 = vld [vmem:[%s350 + $0x48] sm:$0xff]
        %v1953 = vld [vmem:[%s350 + $0x50] sm:$0xff]
        %v1954 = vld [vmem:[%s350 + $0x58] sm:$0xff]
        %v1955 = vld [vmem:[%s350 + $0x60] sm:$0xff]
        %v1956 = vld [vmem:[%s350 + $0x68] sm:$0xff]
        %v1957 = vld [vmem:[%s350 + $0x70] sm:$0xff]
        %v1958 = vld [vmem:[%s350 + $0x78] sm:$0xff]
        %v1959 = vld [vmem:[%s350 + $0x80] sm:$0xff]
        %v1960 = vld [vmem:[%s350 + $0x88] sm:$0xff]
        %v1961 = vld [vmem:[%s350 + $0x90] sm:$0xff]
        %v1962 = vld [vmem:[%s350 + $0x98] sm:$0xff]
        %v1963 = vld [vmem:[%s350 + $0xa0] sm:$0xff]
        %v1964 = vld [vmem:[%s350 + $0xa8] sm:$0xff]
        %v1965 = vld [vmem:[%s350 + $0xb0] sm:$0xff]
        %v1966 = vld [vmem:[%s350 + $0xb8] sm:$0xff]
        %v1967 = vld [vmem:[%s350 + $0xc0] sm:$0xff]
        %v1968 = vld [vmem:[%s350 + $0xc8] sm:$0xff]
        %v1969 = vld [vmem:[%s350 + $0xd0] sm:$0xff]
        %v1970 = vld [vmem:[%s350 + $0xd8] sm:$0xff]
        %v1971 = vld [vmem:[%s350 + $0xe0] sm:$0xff]
        %v1972 = vld [vmem:[%s350 + $0xe8] sm:$0xff]
        %v1973 = vld [vmem:[%s350 + $0xf0] sm:$0xff]
        %v1974 = vld [vmem:[%s350 + $0xf8] sm:$0xff]
        %v1975 = vld [vmem:[%s350 + $0x100] sm:$0xff]
        %v1976 = vld [vmem:[%s350 + $0x108] sm:$0xff]
        %v1977 = vld [vmem:[%s350 + $0x110] sm:$0xff]
        %v1978 = vld [vmem:[%s350 + $0x118] sm:$0xff]
        %v1979 = vld [vmem:[%s350 + $0x120] sm:$0xff]
        %v1980 = vld [vmem:[%s350 + $0x128] sm:$0xff]
        %v1981 = vld [vmem:[%s350 + $0x130] sm:$0xff]
        %v1982 = vld [vmem:[%s350 + $0x138] sm:$0xff]
        %v1983 = vld [vmem:[%s350 + $0x140] sm:$0xff]
        %v1984 = vld [vmem:[%s350 + $0x148] sm:$0xff]
        %v1985 = vld [vmem:[%s350 + $0x150] sm:$0xff]
        %v1986 = vld [vmem:[%s350 + $0x158] sm:$0xff]
        %v1987 = vld [vmem:[%s350 + $0x160] sm:$0xff]
        %v1988 = vld [vmem:[%s350 + $0x168] sm:$0xff]
        %v1989 = vld [vmem:[%s350 + $0x170] sm:$0xff]
        %v1990 = vld [vmem:[%s350 + $0x178] sm:$0xff]
        %v1991 = vld [vmem:[%s350 + $0x180] sm:$0xff]
        %v1992 = vld [vmem:[%s350 + $0x188] sm:$0xff]
        %v1993 = vld [vmem:[%s350 + $0x190] sm:$0xff]
        %v1994 = vld [vmem:[%s350 + $0x198] sm:$0xff]
        %v1995 = vld [vmem:[%s350 + $0x1a0] sm:$0xff]
        %v1996 = vld [vmem:[%s350 + $0x1a8] sm:$0xff]
        %v1997 = vld [vmem:[%s350 + $0x1b0] sm:$0xff]
        %v1998 = vld [vmem:[%s350 + $0x1b8] sm:$0xff]
        %v1999 = vld [vmem:[%s350 + $0x1c0] sm:$0xff]
        %v2000 = vld [vmem:[%s350 + $0x1c8] sm:$0xff]
        %v2001 = vld [vmem:[%s350 + $0x1d0] sm:$0xff]
        %v2002 = vld [vmem:[%s350 + $0x1d8] sm:$0xff]
        %v2003 = vld [vmem:[%s350 + $0x1e0] sm:$0xff]
        %v2004 = vld [vmem:[%s350 + $0x1e8] sm:$0xff]
        %v2005 = vld [vmem:[%s350 + $0x1f0] sm:$0xff]
        %v2006 = vld [vmem:[%s350 + $0x1f8] sm:$0xff]
        %v2007 = vpack.c.bf16 %v1951, %v1943
        %v2008 = vpack.c.bf16 %v1952, %v1944
        %v2009 = vpack.c.bf16 %v1953, %v1945
        %v2010 = vpack.c.bf16 %v1954, %v1946
        %v2011 = vpack.c.bf16 %v1955, %v1947
        %v2012 = vpack.c.bf16 %v1956, %v1948
        %v2013 = vpack.c.bf16 %v1957, %v1949
        %v2014 = vpack.c.bf16 %v1958, %v1950
        %v2015 = vpack.c.bf16 %v1967, %v1959
        %v2016 = vpack.c.bf16 %v1968, %v1960
        %v2017 = vpack.c.bf16 %v1969, %v1961
        %v2018 = vpack.c.bf16 %v1970, %v1962
        %v2019 = vpack.c.bf16 %v1971, %v1963
        %v2020 = vpack.c.bf16 %v1972, %v1964
        %v2021 = vpack.c.bf16 %v1973, %v1965
        %v2022 = vpack.c.bf16 %v1974, %v1966
        %v2023 = vpack.c.bf16 %v1983, %v1975
        %v2024 = vpack.c.bf16 %v1984, %v1976
        %v2025 = vpack.c.bf16 %v1985, %v1977
        %v2026 = vpack.c.bf16 %v1986, %v1978
        %v2027 = vpack.c.bf16 %v1987, %v1979
        %v2028 = vpack.c.bf16 %v1988, %v1980
        %v2029 = vpack.c.bf16 %v1989, %v1981
        %v2030 = vpack.c.bf16 %v1990, %v1982
        %v2031 = vpack.c.bf16 %v1999, %v1991
        %v2032 = vpack.c.bf16 %v2000, %v1992
        %v2033 = vpack.c.bf16 %v2001, %v1993
        %v2034 = vpack.c.bf16 %v2002, %v1994
        %v2035 = vpack.c.bf16 %v2003, %v1995
        %v2036 = vpack.c.bf16 %v2004, %v1996
        %v2037 = vpack.c.bf16 %v2005, %v1997
        %v2038 = vpack.c.bf16 %v2006, %v1998
        %v2039 = vld [vmem:[%s6] sm:$0x1]
        %v2040 = vpack.c.bf16 %v1887, %v1879
        %v2041 = vpack.c.bf16 %v1888, %v1880
        %v2042 = vpack.c.bf16 %v1889, %v1881
        %v2043 = vpack.c.bf16 %v1890, %v1882
        %v2044 = vpack.c.bf16 %v1891, %v1883
        %v2045 = vpack.c.bf16 %v1892, %v1884
        %v2046 = vpack.c.bf16 %v1893, %v1885
        %v2047 = vpack.c.bf16 %v1894, %v1886
        %v2048 = vpack.c.bf16 %v1903, %v1895
        %v2049 = vpack.c.bf16 %v1904, %v1896
        %v2050 = vpack.c.bf16 %v1905, %v1897
        %v2051 = vpack.c.bf16 %v1906, %v1898
        %v2052 = vpack.c.bf16 %v1907, %v1899
        %v2053 = vpack.c.bf16 %v1908, %v1900
        %v2054 = vpack.c.bf16 %v1909, %v1901
        %v2055 = vpack.c.bf16 %v1910, %v1902
        %v2056 = vpack.c.bf16 %v1919, %v1911
        %v2057 = vpack.c.bf16 %v1920, %v1912
        %v2058 = vpack.c.bf16 %v1921, %v1913
        %v2059 = vpack.c.bf16 %v1922, %v1914
        %v2060 = vpack.c.bf16 %v1923, %v1915
        %v2061 = vpack.c.bf16 %v1924, %v1916
        %v2062 = vpack.c.bf16 %v1925, %v1917
        %v2063 = vpack.c.bf16 %v1926, %v1918
        %v2064 = vpack.c.bf16 %v1935, %v1927
        %v2065 = vpack.c.bf16 %v1936, %v1928
        %v2066 = vpack.c.bf16 %v1937, %v1929
        %v2067 = vpack.c.bf16 %v1938, %v1930
        %v2068 = vpack.c.bf16 %v1939, %v1931
        %v2069 = vpack.c.bf16 %v1940, %v1932
        %v2070 = vpack.c.bf16 %v1941, %v1933
        %v2071 = vpack.c.bf16 %v1942, %v1934
        %v2072 = vld [vmem:[%s7] sm:$0x1]
        %vm2073 = vcmask 523264
        %v2075 = vsel %vm2073, %v2072, 0
        %2077 = vmatprep.subr.bf16.mxu0 0
        %2078 = vmatpush1.bf16.msra.mxu0 0
        %2079 = vmatprep.subr.bf16.mxu0 0
        %2080 = vmatpush1.bf16.msra.mxu0 0
        %2081 = vmatprep.subr.bf16.mxu0 0
        %2082 = vmatpush1.bf16.msra.mxu0 0
        %2083 = vmatprep.subr.bf16.mxu0 0
        %2084 = vmatpush1.bf16.msra.mxu0 0
        %2085 = vmatprep.subr.bf16.mxu0 %v2032
        %2086 = vmatpush1.bf16.msra.mxu0 %v2031
        %2087 = vmatprep.subr.bf16.mxu0 %v2024
        %2088 = vmatpush1.bf16.msra.mxu0 %v2023
        %2089 = vmatprep.subr.bf16.mxu0 %v2016
        %2090 = vmatpush1.bf16.msra.mxu0 %v2015
        %2091 = vmatprep.subr.bf16.mxu0 %v2008
        %2092 = vmatpush1.bf16.msra.mxu0 %v2007
        %2093 = vmatprep.subr.bf16.mxu0 0
        %2094 = vmatpush2.bf16.msra.mxu0 0
        %2095 = vmatprep.subr.bf16.mxu0 0
        %2096 = vmatpush2.bf16.msra.mxu0 0
        %2097 = vmatprep.subr.bf16.mxu0 0
        %2098 = vmatpush2.bf16.msra.mxu0 0
        %2099 = vmatprep.subr.bf16.mxu0 0
        %2100 = vmatpush2.bf16.msra.mxu0 0
        %2101 = vmatprep.subr.bf16.mxu0 0
        %2102 = vmatpush2.bf16.msra.mxu0 0
        %2103 = vmatprep.subr.bf16.mxu0 0
        %2104 = vmatpush2.bf16.msra.mxu0 0
        %2105 = vmatprep.subr.bf16.mxu0 0
        %2106 = vmatpush2.bf16.msra.mxu0 0
        %2107 = vmatprep.subr.bf16.mxu0 0
        %2108 = vmatpush2.bf16.msra.mxu0 0
        %2109 = vmatprep.mubr.bf16.mxu0 0
        %2110 = vmatmul.mubr.bf16.gmra.mxu0 %v2075
        %v2111 = vpop.f32.mrf.mxu0
        %v2112 = vadd.f32 0.0, %v2111
        %v2113 = vpop.f32.mrf.mxu0
        %v2114 = vadd.f32 0.0, %v2113
        %v2115 = vpop.f32.mrf.mxu0
        %v2116 = vpop.f32.mrf.mxu0
        %2117 = vdwg.mxu0
        %2118 = vmatprep.subr.bf16.mxu0 0
        %2119 = vmatpush1.bf16.msra.mxu0 0
        %2120 = vmatprep.subr.bf16.mxu0 0
        %2121 = vmatpush1.bf16.msra.mxu0 0
        %2122 = vmatprep.subr.bf16.mxu0 0
        %2123 = vmatpush1.bf16.msra.mxu0 0
        %2124 = vmatprep.subr.bf16.mxu0 0
        %2125 = vmatpush1.bf16.msra.mxu0 0
        %2126 = vmatprep.subr.bf16.mxu0 %v2034
        %2127 = vmatpush1.bf16.msra.mxu0 %v2033
        %2128 = vmatprep.subr.bf16.mxu0 %v2026
        %2129 = vmatpush1.bf16.msra.mxu0 %v2025
        %2130 = vmatprep.subr.bf16.mxu0 %v2018
        %2131 = vmatpush1.bf16.msra.mxu0 %v2017
        %2132 = vmatprep.subr.bf16.mxu0 %v2010
        %2133 = vmatpush1.bf16.msra.mxu0 %v2009
        %2134 = vmatprep.subr.bf16.mxu0 0
        %2135 = vmatpush2.bf16.msra.mxu0 0
        %2136 = vmatprep.subr.bf16.mxu0 0
        %2137 = vmatpush2.bf16.msra.mxu0 0
        %2138 = vmatprep.subr.bf16.mxu0 0
        %2139 = vmatpush2.bf16.msra.mxu0 0
        %2140 = vmatprep.subr.bf16.mxu0 0
        %2141 = vmatpush2.bf16.msra.mxu0 0
        %2142 = vmatprep.subr.bf16.mxu0 0
        %2143 = vmatpush2.bf16.msra.mxu0 0
        %2144 = vmatprep.subr.bf16.mxu0 0
        %2145 = vmatpush2.bf16.msra.mxu0 0
        %2146 = vmatprep.subr.bf16.mxu0 0
        %2147 = vmatpush2.bf16.msra.mxu0 0
        %2148 = vmatprep.subr.bf16.mxu0 0
        %2149 = vmatpush2.bf16.msra.mxu0 0
        %2150 = vmatprep.mubr.bf16.mxu0 0
        %2151 = vmatmul.mubr.bf16.gmra.mxu0 %v2075
        %v2152 = vpop.f32.mrf.mxu0
        %v2153 = vadd.f32 0.0, %v2152
        %v2154 = vpop.f32.mrf.mxu0
        %v2155 = vadd.f32 0.0, %v2154
        %v2156 = vpop.f32.mrf.mxu0
        %v2157 = vpop.f32.mrf.mxu0
        %2158 = vdwg.mxu0
        %2159 = vmatprep.subr.bf16.mxu0 0
        %2160 = vmatpush1.bf16.msra.mxu0 0
        %2161 = vmatprep.subr.bf16.mxu0 0
        %2162 = vmatpush1.bf16.msra.mxu0 0
        %2163 = vmatprep.subr.bf16.mxu0 0
        %2164 = vmatpush1.bf16.msra.mxu0 0
        %2165 = vmatprep.subr.bf16.mxu0 0
        %2166 = vmatpush1.bf16.msra.mxu0 0
        %2167 = vmatprep.subr.bf16.mxu0 %v2036
        %2168 = vmatpush1.bf16.msra.mxu0 %v2035
        %2169 = vmatprep.subr.bf16.mxu0 %v2028
        %2170 = vmatpush1.bf16.msra.mxu0 %v2027
        %2171 = vmatprep.subr.bf16.mxu0 %v2020
        %2172 = vmatpush1.bf16.msra.mxu0 %v2019
        %2173 = vmatprep.subr.bf16.mxu0 %v2012
        %2174 = vmatpush1.bf16.msra.mxu0 %v2011
        %2175 = vmatprep.subr.bf16.mxu0 0
        %2176 = vmatpush2.bf16.msra.mxu0 0
        %2177 = vmatprep.subr.bf16.mxu0 0
        %2178 = vmatpush2.bf16.msra.mxu0 0
        %2179 = vmatprep.subr.bf16.mxu0 0
        %2180 = vmatpush2.bf16.msra.mxu0 0
        %2181 = vmatprep.subr.bf16.mxu0 0
        %2182 = vmatpush2.bf16.msra.mxu0 0
        %2183 = vmatprep.subr.bf16.mxu0 0
        %2184 = vmatpush2.bf16.msra.mxu0 0
        %2185 = vmatprep.subr.bf16.mxu0 0
        %2186 = vmatpush2.bf16.msra.mxu0 0
        %2187 = vmatprep.subr.bf16.mxu0 0
        %2188 = vmatpush2.bf16.msra.mxu0 0
        %2189 = vmatprep.subr.bf16.mxu0 0
        %2190 = vmatpush2.bf16.msra.mxu0 0
        %2191 = vmatprep.mubr.bf16.mxu0 0
        %2192 = vmatmul.mubr.bf16.gmra.mxu0 %v2075
        %v2193 = vpop.f32.mrf.mxu0
        %v2194 = vadd.f32 0.0, %v2193
        %v2195 = vpop.f32.mrf.mxu0
        %v2196 = vadd.f32 0.0, %v2195
        %v2197 = vpop.f32.mrf.mxu0
        %v2198 = vpop.f32.mrf.mxu0
        %2199 = vdwg.mxu0
        %2200 = vmatprep.subr.bf16.mxu0 0
        %2201 = vmatpush1.bf16.msra.mxu0 0
        %2202 = vmatprep.subr.bf16.mxu0 0
        %2203 = vmatpush1.bf16.msra.mxu0 0
        %2204 = vmatprep.subr.bf16.mxu0 0
        %2205 = vmatpush1.bf16.msra.mxu0 0
        %2206 = vmatprep.subr.bf16.mxu0 0
        %2207 = vmatpush1.bf16.msra.mxu0 0
        %2208 = vmatprep.subr.bf16.mxu0 %v2038
        %2209 = vmatpush1.bf16.msra.mxu0 %v2037
        %2210 = vmatprep.subr.bf16.mxu0 %v2030
        %2211 = vmatpush1.bf16.msra.mxu0 %v2029
        %2212 = vmatprep.subr.bf16.mxu0 %v2022
        %2213 = vmatpush1.bf16.msra.mxu0 %v2021
        %2214 = vmatprep.subr.bf16.mxu0 %v2014
        %2215 = vmatpush1.bf16.msra.mxu0 %v2013
        %2216 = vmatprep.subr.bf16.mxu0 0
        %2217 = vmatpush2.bf16.msra.mxu0 0
        %2218 = vmatprep.subr.bf16.mxu0 0
        %2219 = vmatpush2.bf16.msra.mxu0 0
        %2220 = vmatprep.subr.bf16.mxu0 0
        %2221 = vmatpush2.bf16.msra.mxu0 0
        %2222 = vmatprep.subr.bf16.mxu0 0
        %2223 = vmatpush2.bf16.msra.mxu0 0
        %2224 = vmatprep.subr.bf16.mxu0 0
        %2225 = vmatpush2.bf16.msra.mxu0 0
        %2226 = vmatprep.subr.bf16.mxu0 0
        %2227 = vmatpush2.bf16.msra.mxu0 0
        %2228 = vmatprep.subr.bf16.mxu0 0
        %2229 = vmatpush2.bf16.msra.mxu0 0
        %2230 = vmatprep.subr.bf16.mxu0 0
        %2231 = vmatpush2.bf16.msra.mxu0 0
        %2232 = vmatprep.mubr.bf16.mxu0 0
        %2233 = vmatmul.mubr.bf16.gmra.mxu0 %v2075
        %v2234 = vpop.f32.mrf.mxu0
        %v2235 = vadd.f32 0.0, %v2234
        %v2236 = vpop.f32.mrf.mxu0
        %v2237 = vadd.f32 0.0, %v2236
        %v2238 = vpop.f32.mrf.mxu0
        %v2239 = vpop.f32.mrf.mxu0
        %2240 = vdwg.mxu0
        %v2242 = vsel %vm2073, %v2039, 0
        %2244 = vmatprep.subr.bf16.mxu0 0
        %2245 = vmatpush1.bf16.msra.mxu0 0
        %2246 = vmatprep.subr.bf16.mxu0 0
        %2247 = vmatpush1.bf16.msra.mxu0 0
        %2248 = vmatprep.subr.bf16.mxu0 0
        %2249 = vmatpush1.bf16.msra.mxu0 0
        %2250 = vmatprep.subr.bf16.mxu0 0
        %2251 = vmatpush1.bf16.msra.mxu0 0
        %2252 = vmatprep.subr.bf16.mxu0 %v2065
        %2253 = vmatpush1.bf16.msra.mxu0 %v2064
        %2254 = vmatprep.subr.bf16.mxu0 %v2057
        %2255 = vmatpush1.bf16.msra.mxu0 %v2056
        %2256 = vmatprep.subr.bf16.mxu0 %v2049
        %2257 = vmatpush1.bf16.msra.mxu0 %v2048
        %2258 = vmatprep.subr.bf16.mxu0 %v2041
        %2259 = vmatpush1.bf16.msra.mxu0 %v2040
        %2260 = vmatprep.subr.bf16.mxu0 0
        %2261 = vmatpush2.bf16.msra.mxu0 0
        %2262 = vmatprep.subr.bf16.mxu0 0
        %2263 = vmatpush2.bf16.msra.mxu0 0
        %2264 = vmatprep.subr.bf16.mxu0 0
        %2265 = vmatpush2.bf16.msra.mxu0 0
        %2266 = vmatprep.subr.bf16.mxu0 0
        %2267 = vmatpush2.bf16.msra.mxu0 0
        %2268 = vmatprep.subr.bf16.mxu0 0
        %2269 = vmatpush2.bf16.msra.mxu0 0
        %2270 = vmatprep.subr.bf16.mxu0 0
        %2271 = vmatpush2.bf16.msra.mxu0 0
        %2272 = vmatprep.subr.bf16.mxu0 0
        %2273 = vmatpush2.bf16.msra.mxu0 0
        %2274 = vmatprep.subr.bf16.mxu0 0
        %2275 = vmatpush2.bf16.msra.mxu0 0
        %2276 = vmatprep.mubr.bf16.mxu0 0
        %2277 = vmatmul.mubr.bf16.gmra.mxu0 %v2242
        %v2278 = vpop.f32.mrf.mxu0
        %v2279 = vadd.f32 %v2112, %v2278
        %v2280 = vpop.f32.mrf.mxu0
        %v2281 = vadd.f32 %v2114, %v2280
        %v2282 = vpop.f32.mrf.mxu0
        %v2283 = vpop.f32.mrf.mxu0
        %2284 = vdwg.mxu0
        %2285 = vmatprep.subr.bf16.mxu0 0
        %2286 = vmatpush1.bf16.msra.mxu0 0
        %2287 = vmatprep.subr.bf16.mxu0 0
        %2288 = vmatpush1.bf16.msra.mxu0 0
        %2289 = vmatprep.subr.bf16.mxu0 0
        %2290 = vmatpush1.bf16.msra.mxu0 0
        %2291 = vmatprep.subr.bf16.mxu0 0
        %2292 = vmatpush1.bf16.msra.mxu0 0
        %2293 = vmatprep.subr.bf16.mxu0 %v2067
        %2294 = vmatpush1.bf16.msra.mxu0 %v2066
        %2295 = vmatprep.subr.bf16.mxu0 %v2059
        %2296 = vmatpush1.bf16.msra.mxu0 %v2058
        %2297 = vmatprep.subr.bf16.mxu0 %v2051
        %2298 = vmatpush1.bf16.msra.mxu0 %v2050
        %2299 = vmatprep.subr.bf16.mxu0 %v2043
        %2300 = vmatpush1.bf16.msra.mxu0 %v2042
        %2301 = vmatprep.subr.bf16.mxu0 0
        %2302 = vmatpush2.bf16.msra.mxu0 0
        %2303 = vmatprep.subr.bf16.mxu0 0
        %2304 = vmatpush2.bf16.msra.mxu0 0
        %2305 = vmatprep.subr.bf16.mxu0 0
        %2306 = vmatpush2.bf16.msra.mxu0 0
        %2307 = vmatprep.subr.bf16.mxu0 0
        %2308 = vmatpush2.bf16.msra.mxu0 0
        %2309 = vmatprep.subr.bf16.mxu0 0
        %2310 = vmatpush2.bf16.msra.mxu0 0
        %2311 = vmatprep.subr.bf16.mxu0 0
        %2312 = vmatpush2.bf16.msra.mxu0 0
        %2313 = vmatprep.subr.bf16.mxu0 0
        %2314 = vmatpush2.bf16.msra.mxu0 0
        %2315 = vmatprep.subr.bf16.mxu0 0
        %2316 = vmatpush2.bf16.msra.mxu0 0
        %2317 = vmatprep.mubr.bf16.mxu0 0
        %2318 = vmatmul.mubr.bf16.gmra.mxu0 %v2242
        %v2319 = vpop.f32.mrf.mxu0
        %v2320 = vadd.f32 %v2153, %v2319
        %v2321 = vpop.f32.mrf.mxu0
        %v2322 = vadd.f32 %v2155, %v2321
        %v2323 = vpop.f32.mrf.mxu0
        %v2324 = vpop.f32.mrf.mxu0
        %2325 = vdwg.mxu0
        %2326 = vmatprep.subr.bf16.mxu0 0
        %2327 = vmatpush1.bf16.msra.mxu0 0
        %2328 = vmatprep.subr.bf16.mxu0 0
        %2329 = vmatpush1.bf16.msra.mxu0 0
        %2330 = vmatprep.subr.bf16.mxu0 0
        %2331 = vmatpush1.bf16.msra.mxu0 0
        %2332 = vmatprep.subr.bf16.mxu0 0
        %2333 = vmatpush1.bf16.msra.mxu0 0
        %2334 = vmatprep.subr.bf16.mxu0 %v2069
        %2335 = vmatpush1.bf16.msra.mxu0 %v2068
        %2336 = vmatprep.subr.bf16.mxu0 %v2061
        %2337 = vmatpush1.bf16.msra.mxu0 %v2060
        %2338 = vmatprep.subr.bf16.mxu0 %v2053
        %2339 = vmatpush1.bf16.msra.mxu0 %v2052
        %2340 = vmatprep.subr.bf16.mxu0 %v2045
        %2341 = vmatpush1.bf16.msra.mxu0 %v2044
        %2342 = vmatprep.subr.bf16.mxu0 0
        %2343 = vmatpush2.bf16.msra.mxu0 0
        %2344 = vmatprep.subr.bf16.mxu0 0
        %2345 = vmatpush2.bf16.msra.mxu0 0
        %2346 = vmatprep.subr.bf16.mxu0 0
        %2347 = vmatpush2.bf16.msra.mxu0 0
        %2348 = vmatprep.subr.bf16.mxu0 0
        %2349 = vmatpush2.bf16.msra.mxu0 0
        %2350 = vmatprep.subr.bf16.mxu0 0
        %2351 = vmatpush2.bf16.msra.mxu0 0
        %2352 = vmatprep.subr.bf16.mxu0 0
        %2353 = vmatpush2.bf16.msra.mxu0 0
        %2354 = vmatprep.subr.bf16.mxu0 0
        %2355 = vmatpush2.bf16.msra.mxu0 0
        %2356 = vmatprep.subr.bf16.mxu0 0
        %2357 = vmatpush2.bf16.msra.mxu0 0
        %2358 = vmatprep.mubr.bf16.mxu0 0
        %2359 = vmatmul.mubr.bf16.gmra.mxu0 %v2242
        %v2360 = vpop.f32.mrf.mxu0
        %v2361 = vadd.f32 %v2194, %v2360
        %v2362 = vpop.f32.mrf.mxu0
        %v2363 = vadd.f32 %v2196, %v2362
        %v2364 = vpop.f32.mrf.mxu0
        %v2365 = vpop.f32.mrf.mxu0
        %2366 = vdwg.mxu0
        %2367 = vmatprep.subr.bf16.mxu0 0
        %2368 = vmatpush1.bf16.msra.mxu0 0
        %2369 = vmatprep.subr.bf16.mxu0 0
        %2370 = vmatpush1.bf16.msra.mxu0 0
        %2371 = vmatprep.subr.bf16.mxu0 0
        %2372 = vmatpush1.bf16.msra.mxu0 0
        %2373 = vmatprep.subr.bf16.mxu0 0
        %2374 = vmatpush1.bf16.msra.mxu0 0
        %2375 = vmatprep.subr.bf16.mxu0 %v2071
        %2376 = vmatpush1.bf16.msra.mxu0 %v2070
        %2377 = vmatprep.subr.bf16.mxu0 %v2063
        %2378 = vmatpush1.bf16.msra.mxu0 %v2062
        %2379 = vmatprep.subr.bf16.mxu0 %v2055
        %2380 = vmatpush1.bf16.msra.mxu0 %v2054
        %2381 = vmatprep.subr.bf16.mxu0 %v2047
        %2382 = vmatpush1.bf16.msra.mxu0 %v2046
        %2383 = vmatprep.subr.bf16.mxu0 0
        %2384 = vmatpush2.bf16.msra.mxu0 0
        %2385 = vmatprep.subr.bf16.mxu0 0
        %2386 = vmatpush2.bf16.msra.mxu0 0
        %2387 = vmatprep.subr.bf16.mxu0 0
        %2388 = vmatpush2.bf16.msra.mxu0 0
        %2389 = vmatprep.subr.bf16.mxu0 0
        %2390 = vmatpush2.bf16.msra.mxu0 0
        %2391 = vmatprep.subr.bf16.mxu0 0
        %2392 = vmatpush2.bf16.msra.mxu0 0
        %2393 = vmatprep.subr.bf16.mxu0 0
        %2394 = vmatpush2.bf16.msra.mxu0 0
        %2395 = vmatprep.subr.bf16.mxu0 0
        %2396 = vmatpush2.bf16.msra.mxu0 0
        %2397 = vmatprep.subr.bf16.mxu0 0
        %2398 = vmatpush2.bf16.msra.mxu0 0
        %2399 = vmatprep.mubr.bf16.mxu0 0
        %2400 = vmatmul.mubr.bf16.gmra.mxu0 %v2242
        %v2401 = vpop.f32.mrf.mxu0
        %v2402 = vadd.f32 %v2235, %v2401
        %v2403 = vpop.f32.mrf.mxu0
        %v2404 = vadd.f32 %v2237, %v2403
        %v2405 = vpop.f32.mrf.mxu0
        %v2406 = vpop.f32.mrf.mxu0
        %2407 = vdwg.mxu0
        %v2408 = vld [vmem:[%s8] sm:$0x3]
        %2410 = vset.pattern.permute.xlu0 0
        %2411 = vperm.xlu0 %2410, %v2408
        %v2412 = vpop.permute.xlu0 %2411
        %v2414 = vadd.f32 %v2279, %v2412
        %v2415 = vadd.f32 %v2281, %v2412
        %v2416 = vadd.f32 %v2320, %v2412
        %v2417 = vadd.f32 %v2322, %v2412
        %v2418 = vadd.f32 %v2361, %v2412
        %v2419 = vadd.f32 %v2363, %v2412
        %v2420 = vadd.f32 %v2402, %v2412
        %v2421 = vadd.f32 %v2404, %v2412
        %v2422 = vxor.u32 %v2414, 2147483648
        %v2423 = vxor.u32 %v2415, 2147483648
        %v2424 = vxor.u32 %v2416, 2147483648
        %v2425 = vxor.u32 %v2417, 2147483648
        %v2426 = vxor.u32 %v2418, 2147483648
        %v2427 = vxor.u32 %v2419, 2147483648
        %v2428 = vxor.u32 %v2420, 2147483648
        %v2429 = vxor.u32 %v2421, 2147483648
        %v2430 = vmul.f32 %v2422, 1.442695
        %v2431 = vpow.pop %v2430
        %v2432 = vmul.f32 %v2423, 1.442695
        %v2433 = vpow.pop %v2432
        %v2434 = vmul.f32 %v2424, 1.442695
        %v2435 = vpow.pop %v2434
        %v2436 = vmul.f32 %v2425, 1.442695
        %v2437 = vpow.pop %v2436
        %v2438 = vmul.f32 %v2426, 1.442695
        %v2439 = vpow.pop %v2438
        %v2440 = vmul.f32 %v2427, 1.442695
        %v2441 = vpow.pop %v2440
        %v2442 = vmul.f32 %v2428, 1.442695
        %v2443 = vpow.pop %v2442
        %v2444 = vmul.f32 %v2429, 1.442695
        %v2445 = vpow.pop %v2444
        %v2446 = vadd.f32 %v2431, 1.0
        %v2447 = vadd.f32 %v2433, 1.0
        %v2448 = vadd.f32 %v2435, 1.0
        %v2449 = vadd.f32 %v2437, 1.0
        %v2450 = vadd.f32 %v2439, 1.0
        %v2451 = vadd.f32 %v2441, 1.0
        %v2452 = vadd.f32 %v2443, 1.0
        %v2453 = vadd.f32 %v2445, 1.0
        %v2454 = vrcp.pop %v2446
        %v2455 = vmul.f32 1.0, %v2454
        %v2456 = vrcp.pop %v2447
        %v2457 = vmul.f32 1.0, %v2456
        %v2458 = vrcp.pop %v2448
        %v2459 = vmul.f32 1.0, %v2458
        %v2460 = vrcp.pop %v2449
        %v2461 = vmul.f32 1.0, %v2460
        %v2462 = vrcp.pop %v2450
        %v2463 = vmul.f32 1.0, %v2462
        %v2464 = vrcp.pop %v2451
        %v2465 = vmul.f32 1.0, %v2464
        %v2466 = vrcp.pop %v2452
        %v2467 = vmul.f32 1.0, %v2466
        %v2468 = vrcp.pop %v2453
        %v2469 = vmul.f32 1.0, %v2468
        %v2478 = vcombine.low %v2455, %v2457
        %v2479 = vcombine.low %v2459, %v2461
        %v2481 = vunpack.c.l.s4 1983009808
        %v2482 = vunpack.c.0.s8 %v2481
        %v2483 = vlaneseq
        %v2484 = vshrl.u32 %v2483, 7
        %v2485 = vsub.s32 %v2482, %v2484
        %v2486 = vrot.slane %v2478, %v2485
        %v2488 = vunpack.c.l.s4 1983009808
        %v2489 = vunpack.c.0.s8 %v2488
        %v2490 = vlaneseq
        %v2491 = vshrl.u32 %v2490, 7
        %v2492 = vsub.s32 %v2489, %v2491
        %v2493 = vrot.slane %v2479, %v2492
        %v2494 = vcombine.low %v2486, %v2493
        %v2495 = vcombine.low %v2463, %v2465
        %v2496 = vcombine.low %v2467, %v2469
        %v2498 = vunpack.c.l.s4 1983009808
        %v2499 = vunpack.c.0.s8 %v2498
        %v2500 = vlaneseq
        %v2501 = vshrl.u32 %v2500, 7
        %v2502 = vsub.s32 %v2499, %v2501
        %v2503 = vrot.slane %v2495, %v2502
        %v2505 = vunpack.c.l.s4 1983009808
        %v2506 = vunpack.c.0.s8 %v2505
        %v2507 = vlaneseq
        %v2508 = vshrl.u32 %v2507, 7
        %v2509 = vsub.s32 %v2506, %v2508
        %v2510 = vrot.slane %v2496, %v2509
        %v2511 = vcombine.low %v2503, %v2510
        %2514 = vst [vmem:[%s393] sm:$0xff] %v2494
        %2515 = vst [vmem:[%s393 + $0x8] sm:$0xff] %v2511
        %s2516 = sand.u32 %s251, 1
        %s2517 = scalar_lea.sflag [#allocation4], %s2516
        %s2518 = sand.u32 %s251, 1
        %s2519 = smul.addr %s2518, 16
        %s2520 = scalar_lea.vmem [#allocation5], %s2519
        // Predicated region
        $region61: #{tpu_custom_call.1} parent=55 // pred_check
          %p2521 = pneg %p261
        $region62: #{tpu_custom_call.1} parent=55 // pred_check_branch
          %2523 = sbr.rel (%p2521) target = $region64
        $region63: #{tpu_custom_call.1} parent=55 // pred_region
          %s2524 = smul.u32 8, %s31
          %s2526 = ssub.s32 256, 256
          %2527 = vsyncadd %s2517, %s2526
          %s2528 = smul.addr %s30, 8
          %s2529 = sadd.s32 %s2524, %s2528
          %s2530 = smul.addr %s2529, 32
          %s2531 = scalar_lea.hbm %s9, %s2530
          %s2533 = sshll.u32 %s2520, 4
          %s2534 = int_to_ptr.vmem [resolvable:$true] %s2533
          %2536 = dma.vmem_to_hbm [thread:$0]  %s2534, 256, %s2531, %s2517
        $region64: #{tpu_custom_call.1} parent=55 // pred_fallthru
          _
      $region56: #{tpu_custom_call.1} parent=5 // pred_fallthru
        _
      %p2537 = scmp.le.s32.totalorder 2, %s21
      // Predicated region
      $region65: #{tpu_custom_call.1} parent=5 // pred_check
        %p2538 = pneg %p2537
      $region66: #{tpu_custom_call.1} parent=5 // pred_check_branch
        %2540 = sbr.rel (%p2538) target = $region68
      $region67: #{tpu_custom_call.1} parent=5 // pred_region
        %s2541 = ssub.s32 %s21, 2
        // Predicated region
        $region69: #{tpu_custom_call.1} parent=67 // pred_check
          %p2542 = pneg %p267
        $region70: #{tpu_custom_call.1} parent=67 // pred_check_branch
          %2544 = sbr.rel (%p2542) target = $region72
        $region71: #{tpu_custom_call.1} parent=67 // pred_region
          %s2545 = sand.u32 %s252, 1
          %s2546 = scalar_lea.sflag [#allocation4], %s2545
          %s2547 = sand.u32 %s252, 1
          %s2548 = smul.addr %s2547, 16
          %s2549 = scalar_lea.vmem [#allocation5], %s2548
          %2550 = dma.done %s2546, 256
        $region72: #{tpu_custom_call.1} parent=67 // pred_fallthru
          _
      $region68: #{tpu_custom_call.1} parent=5 // pred_fallthru
        _
    $region6: #{tpu_custom_call.1} parent=1 // loop_footer
      %s25 = sadd.s32 1, %s21
    $region7: #{tpu_custom_call.1} parent=1 // loop_footer_branch
      %20 = sbr.rel target = $region3
    $region8: #{tpu_custom_call.1} parent=1 // loop_exit
      _
    %2551 = vsyncpa [#allocation3], 1
    %s2552 = scalar_lea.sflag [#allocation3], 1
    %2553 = vsyncpa %s2552, 1
    %2554 = vsyncpa [#allocation4], 1
    %s2555 = scalar_lea.sflag [#allocation4], 1
    %2556 = vsyncpa %s2555, 1

</llo_original>
